<compile_context>
chip_gen: v5e
topology: v5e:2x2
jax: 0.10.0
libtpu: 0.0.40
codegen_flags: <defaults>
</compile_context>

<pallas_src>
import functools

import jax
import jax.numpy as jnp
from jax import lax
from jax.experimental import pallas as pl
from jax.experimental.pallas import tpu as pltpu


def _attention_kernel(x_ref, wqkv_ref, bqkv_ref, wproj_ref, bproj_ref, o_ref,
                      *, num_heads, scale):
    # x_ref:     (1, N, C)   tokens for one batch element
    # wqkv_ref:  (C, 3C)     qkv_weight^T   (VMEM-resident)
    # bqkv_ref:  (1, 3C)
    # wproj_ref: (C, C)      proj_weight^T  (VMEM-resident)
    # bproj_ref: (1, C)
    # o_ref:     (1, N, C)
    x = x_ref[0]                                   # (N, C)
    in_dtype = x.dtype                             # keep MXU operands in input dtype
    N, C = x.shape
    hd = C // num_heads

    # Fused QKV projection: one big lane-dense matmul with f32 accumulation.
    qkv = jnp.dot(x, wqkv_ref[...], preferred_element_type=jnp.float32)
    qkv = qkv + bqkv_ref[...].astype(jnp.float32)              # (N, 3C) f32

    wproj = wproj_ref[...]                                      # (C, C) native dtype

    # Output accumulator initialized with the projection bias (hoisted broadcast).
    acc = jnp.broadcast_to(bproj_ref[...].astype(jnp.float32), (N, C))

    # Per-head attention (num_heads is a static Python int -> unrolled loop).
    for h in range(num_heads):
        q = qkv[:, h * hd:(h + 1) * hd].astype(in_dtype)                  # (N, hd)
        k = qkv[:, C + h * hd:C + (h + 1) * hd].astype(in_dtype)          # (N, hd)
        v = qkv[:, 2 * C + h * hd:2 * C + (h + 1) * hd].astype(in_dtype)  # (N, hd)

        # scores = (q @ k^T) * scale ; contract over head_dim, no explicit transpose.
        s = lax.dot_general(q, k, (((1,), (1,)), ((), ())),
                            preferred_element_type=jnp.float32) * scale   # (N, N)

        # Numerically stable row-wise softmax (exp runs on the EUP slot).
        s = s - jnp.max(s, axis=-1, keepdims=True)
        p = jnp.exp(s)
        p = p / jnp.sum(p, axis=-1, keepdims=True)

        # TODO(synk): attn_drop > 0.0 under training would need pltpu.prng_seed /
        # pltpu.prng_random_bits; module default attn_drop = 0.0 -> identity.

        ctx = jnp.dot(p.astype(in_dtype), v,
                      preferred_element_type=jnp.float32)                 # (N, hd)

        # concat_h(ctx_h) @ Wp^T  ==  sum_h ctx_h @ Wp^T[h*hd:(h+1)*hd, :]
        acc = acc + jnp.dot(ctx.astype(in_dtype),
                            wproj[h * hd:(h + 1) * hd, :],
                            preferred_element_type=jnp.float32)           # (N, C)

    # TODO(synk): proj_drop > 0.0 under training -> identity here (drop == 0.0).
    o_ref[0] = acc.astype(o_ref.dtype)


def attention_functional(x, qkv_weight, qkv_bias, proj_weight, proj_bias,
                         training=False, num_heads=8, qk_scale=None):
    """x: (B, N, C). qkv_weight: (3C, C), qkv_bias: (3C,),
    proj_weight: (C, C), proj_bias: (C,). Returns (B, N, C)."""
    del training  # attn_drop = proj_drop = 0.0 -> dropout is identity
    B, N, C = x.shape
    assert C % num_heads == 0, "dim must be divisible by num_heads"
    head_dim = C // num_heads
    scale = float(qk_scale) if qk_scale is not None else float(head_dim) ** -0.5

    # Pre-transpose weights once in the wrapper so the kernel does plain
    # row-major (tokens x in) @ (in x out) matmuls on the MXU.
    wqkv_t = qkv_weight.T                    # (C, 3C)
    wproj_t = proj_weight.T                  # (C, C)
    bqkv = qkv_bias.reshape(1, 3 * C)
    bproj = proj_bias.reshape(1, C)

    kernel = functools.partial(_attention_kernel, num_heads=num_heads, scale=scale)

    out = pl.pallas_call(
        kernel,
        out_shape=jax.ShapeDtypeStruct((B, N, C), x.dtype),
        grid_spec=pltpu.PrefetchScalarGridSpec(
            num_scalar_prefetch=0,
            grid=(B,),                                        # one step per batch element
            in_specs=[
                pl.BlockSpec((1, N, C), lambda b: (b, 0, 0)),  # x block
                pl.BlockSpec((C, 3 * C), lambda b: (0, 0)),    # W_qkv^T (resident)
                pl.BlockSpec((1, 3 * C), lambda b: (0, 0)),    # b_qkv
                pl.BlockSpec((C, C), lambda b: (0, 0)),        # W_proj^T (resident)
                pl.BlockSpec((1, C), lambda b: (0, 0)),        # b_proj
            ],
            out_specs=pl.BlockSpec((1, N, C), lambda b: (b, 0, 0)),
        ),
        compiler_params=pltpu.CompilerParams(
            dimension_semantics=("parallel",)),                # batch axis -> megacore
    )(x, wqkv_t, bqkv, wproj_t, bproj)
    return out


if __name__ == "__main__":
    # Small shapes consistent with the module: batch=2, seq=16, dim=64, heads=8.
    B, N, C = 2, 16, 64
    num_heads = 8
    head_dim = C // num_heads
    scale = head_dim ** -0.5

    key = jax.random.PRNGKey(0)
    kx, k1, k2, k3, k4 = jax.random.split(key, 5)
    x = jax.random.normal(kx, (B, N, C), dtype=jnp.float32)
    qkv_weight = jax.random.normal(k1, (3 * C, C), dtype=jnp.float32) * 0.05
    qkv_bias = jax.random.normal(k2, (3 * C,), dtype=jnp.float32) * 0.05
    proj_weight = jax.random.normal(k3, (C, C), dtype=jnp.float32) * 0.05
    proj_bias = jax.random.normal(k4, (C,), dtype=jnp.float32) * 0.05

    out = attention_functional(x, qkv_weight, qkv_bias, proj_weight, proj_bias,
                               training=False, num_heads=num_heads)
    out = jax.block_until_ready(out)

    # Pure-JAX reference (same math as the PyTorch forward with drops = 0.0).
    qkv = x @ qkv_weight.T + qkv_bias
    qkv = qkv.reshape(B, N, 3, num_heads, head_dim).transpose(2, 0, 3, 1, 4)
    q, k, v = qkv[0], qkv[1], qkv[2]
    attn = (q @ jnp.swapaxes(k, -2, -1)) * scale
    attn = jax.nn.softmax(attn, axis=-1)
    ref = jnp.swapaxes(attn @ v, 1, 2).reshape(B, N, C)
    ref = ref @ proj_weight.T + proj_bias

    assert out.shape == ref.shape
    max_diff = jnp.max(jnp.abs(out - ref))
    assert jnp.allclose(out, ref, atol=2e-4, rtol=2e-4), (
        f"mismatch vs reference, max abs diff = {max_diff}")
    print("KERNEL_OK")
</pallas_src>

<mosaic_0001>
module attributes {stable_mosaic.version = 11 : i64} {
  func.func @_attention_kernel(%arg0: i32, %arg1: memref<1x16x64xf32, #tpu.memory_space<vmem>>, %arg2: memref<64x192xf32, #tpu.memory_space<vmem>>, %arg3: memref<1x192xf32, #tpu.memory_space<vmem>>, %arg4: memref<64x64xf32, #tpu.memory_space<vmem>>, %arg5: memref<1x64xf32, #tpu.memory_space<vmem>>, %arg6: memref<1x16x64xf32, #tpu.memory_space<vmem>>) attributes {dimension_semantics = [#tpu.dimension_semantics<parallel>], iteration_bounds = array<i64: 2>, scalar_prefetch = 0 : i64, scratch_operands = 0 : i64, tpu.core_type = #tpu.core_type<tc>, window_params = [{transform_indices = @transform_0, window_bounds = array<i64: 1, 16, 64>}, {pipeline_mode = #tpu.pipeline_mode<synchronous>, transform_indices = @transform_1, window_bounds = array<i64: 64, 192>}, {pipeline_mode = #tpu.pipeline_mode<synchronous>, transform_indices = @transform_2, window_bounds = array<i64: 1, 192>}, {pipeline_mode = #tpu.pipeline_mode<synchronous>, transform_indices = @transform_3, window_bounds = array<i64: 64, 64>}, {pipeline_mode = #tpu.pipeline_mode<synchronous>, transform_indices = @transform_4, window_bounds = array<i64: 1, 64>}, {transform_indices = @transform_5, window_bounds = array<i64: 1, 16, 64>}]} {
    %c0 = arith.constant 0 : index
    %c0_0 = arith.constant 0 : index
    %c0_1 = arith.constant 0 : index
    %0 = vector.load %arg1[%c0, %c0_0, %c0_1] : memref<1x16x64xf32, #tpu.memory_space<vmem>>, vector<1x16x64xf32>
    %1 = vector.shape_cast %0 : vector<1x16x64xf32> to vector<16x64xf32>
    %c0_2 = arith.constant 0 : index
    %c0_3 = arith.constant 0 : index
    %2 = vector.load %arg2[%c0_2, %c0_3] : memref<64x192xf32, #tpu.memory_space<vmem>>, vector<64x192xf32>
    %cst = arith.constant dense<0.000000e+00> : vector<16x192xf32>
    %3 = tpu.matmul %1, %2, %cst {dimension_numbers = #tpu.dot_dimension_numbers<[1], [0], [0], [1], [0, 0, 1, 1], [], []>} : vector<16x64xf32>, vector<64x192xf32>, vector<16x192xf32> -> vector<16x192xf32>
    %c0_4 = arith.constant 0 : index
    %c0_5 = arith.constant 0 : index
    %4 = vector.load %arg3[%c0_4, %c0_5] : memref<1x192xf32, #tpu.memory_space<vmem>>, vector<1x192xf32>
    %5 = vector.broadcast %4 : vector<1x192xf32> to vector<16x192xf32>
    %6 = arith.addf %3, %5 : vector<16x192xf32>
    %c0_6 = arith.constant 0 : index
    %c0_7 = arith.constant 0 : index
    %7 = vector.load %arg4[%c0_6, %c0_7] : memref<64x64xf32, #tpu.memory_space<vmem>>, vector<64x64xf32>
    %c0_8 = arith.constant 0 : index
    %c0_9 = arith.constant 0 : index
    %8 = vector.load %arg5[%c0_8, %c0_9] : memref<1x64xf32, #tpu.memory_space<vmem>>, vector<1x64xf32>
    %9 = vector.shape_cast %8 : vector<1x64xf32> to vector<1x64xf32>
    %10 = vector.broadcast %9 : vector<1x64xf32> to vector<16x64xf32>
    %11 = vector.extract_strided_slice %6 {offsets = [0, 0], sizes = [16, 8], strides = [1, 1]} : vector<16x192xf32> to vector<16x8xf32>
    %12 = vector.extract_strided_slice %6 {offsets = [0, 64], sizes = [16, 8], strides = [1, 1]} : vector<16x192xf32> to vector<16x8xf32>
    %13 = vector.extract_strided_slice %6 {offsets = [0, 128], sizes = [16, 8], strides = [1, 1]} : vector<16x192xf32> to vector<16x8xf32>
    %cst_10 = arith.constant dense<0.000000e+00> : vector<16x16xf32>
    %14 = tpu.matmul %11, %12, %cst_10 {dimension_numbers = #tpu.dot_dimension_numbers<[1], [1], [0], [0], [0, 0, 1, 0], [], []>} : vector<16x8xf32>, vector<16x8xf32>, vector<16x16xf32> -> vector<16x16xf32>
    %cst_11 = arith.constant 0.353553385 : f32
    %15 = vector.broadcast %cst_11 : f32 to vector<16x16xf32>
    %16 = arith.mulf %14, %15 : vector<16x16xf32>
    %cst_12 = arith.constant dense<0xFF800000> : vector<16xf32>
    %17 = vector.multi_reduction <maximumf>, %16, %cst_12 [1] : vector<16x16xf32> to vector<16xf32>
    %18 = vector.shape_cast %17 : vector<16xf32> to vector<16x1xf32>
    %19 = vector.broadcast %18 : vector<16x1xf32> to vector<16x16xf32>
    %20 = arith.subf %16, %19 : vector<16x16xf32>
    %21 = math.exp %20 : vector<16x16xf32>
    %cst_13 = arith.constant dense<0.000000e+00> : vector<16xf32>
    %22 = vector.multi_reduction <add>, %21, %cst_13 [1] : vector<16x16xf32> to vector<16xf32>
    %23 = vector.shape_cast %22 : vector<16xf32> to vector<16x1xf32>
    %24 = vector.broadcast %23 : vector<16x1xf32> to vector<16x16xf32>
    %25 = arith.divf %21, %24 : vector<16x16xf32>
    %cst_14 = arith.constant dense<0.000000e+00> : vector<16x8xf32>
    %26 = tpu.matmul %25, %13, %cst_14 {dimension_numbers = #tpu.dot_dimension_numbers<[1], [0], [0], [1], [0, 0, 1, 1], [], []>} : vector<16x16xf32>, vector<16x8xf32>, vector<16x8xf32> -> vector<16x8xf32>
    %27 = vector.extract_strided_slice %7 {offsets = [0, 0], sizes = [8, 64], strides = [1, 1]} : vector<64x64xf32> to vector<8x64xf32>
    %cst_15 = arith.constant dense<0.000000e+00> : vector<16x64xf32>
    %28 = tpu.matmul %26, %27, %cst_15 {dimension_numbers = #tpu.dot_dimension_numbers<[1], [0], [0], [1], [0, 0, 1, 1], [], []>} : vector<16x8xf32>, vector<8x64xf32>, vector<16x64xf32> -> vector<16x64xf32>
    %29 = arith.addf %10, %28 : vector<16x64xf32>
    %30 = vector.extract_strided_slice %6 {offsets = [0, 8], sizes = [16, 8], strides = [1, 1]} : vector<16x192xf32> to vector<16x8xf32>
    %31 = vector.extract_strided_slice %6 {offsets = [0, 72], sizes = [16, 8], strides = [1, 1]} : vector<16x192xf32> to vector<16x8xf32>
    %32 = vector.extract_strided_slice %6 {offsets = [0, 136], sizes = [16, 8], strides = [1, 1]} : vector<16x192xf32> to vector<16x8xf32>
    %cst_16 = arith.constant dense<0.000000e+00> : vector<16x16xf32>
    %33 = tpu.matmul %30, %31, %cst_16 {dimension_numbers = #tpu.dot_dimension_numbers<[1], [1], [0], [0], [0, 0, 1, 0], [], []>} : vector<16x8xf32>, vector<16x8xf32>, vector<16x16xf32> -> vector<16x16xf32>
    %cst_17 = arith.constant 0.353553385 : f32
    %34 = vector.broadcast %cst_17 : f32 to vector<16x16xf32>
    %35 = arith.mulf %33, %34 : vector<16x16xf32>
    %cst_18 = arith.constant dense<0xFF800000> : vector<16xf32>
    %36 = vector.multi_reduction <maximumf>, %35, %cst_18 [1] : vector<16x16xf32> to vector<16xf32>
    %37 = vector.shape_cast %36 : vector<16xf32> to vector<16x1xf32>
    %38 = vector.broadcast %37 : vector<16x1xf32> to vector<16x16xf32>
    %39 = arith.subf %35, %38 : vector<16x16xf32>
    %40 = math.exp %39 : vector<16x16xf32>
    %cst_19 = arith.constant dense<0.000000e+00> : vector<16xf32>
    %41 = vector.multi_reduction <add>, %40, %cst_19 [1] : vector<16x16xf32> to vector<16xf32>
    %42 = vector.shape_cast %41 : vector<16xf32> to vector<16x1xf32>
    %43 = vector.broadcast %42 : vector<16x1xf32> to vector<16x16xf32>
    %44 = arith.divf %40, %43 : vector<16x16xf32>
    %cst_20 = arith.constant dense<0.000000e+00> : vector<16x8xf32>
    %45 = tpu.matmul %44, %32, %cst_20 {dimension_numbers = #tpu.dot_dimension_numbers<[1], [0], [0], [1], [0, 0, 1, 1], [], []>} : vector<16x16xf32>, vector<16x8xf32>, vector<16x8xf32> -> vector<16x8xf32>
    %46 = vector.extract_strided_slice %7 {offsets = [8, 0], sizes = [8, 64], strides = [1, 1]} : vector<64x64xf32> to vector<8x64xf32>
    %cst_21 = arith.constant dense<0.000000e+00> : vector<16x64xf32>
    %47 = tpu.matmul %45, %46, %cst_21 {dimension_numbers = #tpu.dot_dimension_numbers<[1], [0], [0], [1], [0, 0, 1, 1], [], []>} : vector<16x8xf32>, vector<8x64xf32>, vector<16x64xf32> -> vector<16x64xf32>
    %48 = arith.addf %29, %47 : vector<16x64xf32>
    %49 = vector.extract_strided_slice %6 {offsets = [0, 16], sizes = [16, 8], strides = [1, 1]} : vector<16x192xf32> to vector<16x8xf32>
    %50 = vector.extract_strided_slice %6 {offsets = [0, 80], sizes = [16, 8], strides = [1, 1]} : vector<16x192xf32> to vector<16x8xf32>
    %51 = vector.extract_strided_slice %6 {offsets = [0, 144], sizes = [16, 8], strides = [1, 1]} : vector<16x192xf32> to vector<16x8xf32>
    %cst_22 = arith.constant dense<0.000000e+00> : vector<16x16xf32>
    %52 = tpu.matmul %49, %50, %cst_22 {dimension_numbers = #tpu.dot_dimension_numbers<[1], [1], [0], [0], [0, 0, 1, 0], [], []>} : vector<16x8xf32>, vector<16x8xf32>, vector<16x16xf32> -> vector<16x16xf32>
    %cst_23 = arith.constant 0.353553385 : f32
    %53 = vector.broadcast %cst_23 : f32 to vector<16x16xf32>
    %54 = arith.mulf %52, %53 : vector<16x16xf32>
    %cst_24 = arith.constant dense<0xFF800000> : vector<16xf32>
    %55 = vector.multi_reduction <maximumf>, %54, %cst_24 [1] : vector<16x16xf32> to vector<16xf32>
    %56 = vector.shape_cast %55 : vector<16xf32> to vector<16x1xf32>
    %57 = vector.broadcast %56 : vector<16x1xf32> to vector<16x16xf32>
    %58 = arith.subf %54, %57 : vector<16x16xf32>
    %59 = math.exp %58 : vector<16x16xf32>
    %cst_25 = arith.constant dense<0.000000e+00> : vector<16xf32>
    %60 = vector.multi_reduction <add>, %59, %cst_25 [1] : vector<16x16xf32> to vector<16xf32>
    %61 = vector.shape_cast %60 : vector<16xf32> to vector<16x1xf32>
    %62 = vector.broadcast %61 : vector<16x1xf32> to vector<16x16xf32>
    %63 = arith.divf %59, %62 : vector<16x16xf32>
    %cst_26 = arith.constant dense<0.000000e+00> : vector<16x8xf32>
    %64 = tpu.matmul %63, %51, %cst_26 {dimension_numbers = #tpu.dot_dimension_numbers<[1], [0], [0], [1], [0, 0, 1, 1], [], []>} : vector<16x16xf32>, vector<16x8xf32>, vector<16x8xf32> -> vector<16x8xf32>
    %65 = vector.extract_strided_slice %7 {offsets = [16, 0], sizes = [8, 64], strides = [1, 1]} : vector<64x64xf32> to vector<8x64xf32>
    %cst_27 = arith.constant dense<0.000000e+00> : vector<16x64xf32>
    %66 = tpu.matmul %64, %65, %cst_27 {dimension_numbers = #tpu.dot_dimension_numbers<[1], [0], [0], [1], [0, 0, 1, 1], [], []>} : vector<16x8xf32>, vector<8x64xf32>, vector<16x64xf32> -> vector<16x64xf32>
    %67 = arith.addf %48, %66 : vector<16x64xf32>
    %68 = vector.extract_strided_slice %6 {offsets = [0, 24], sizes = [16, 8], strides = [1, 1]} : vector<16x192xf32> to vector<16x8xf32>
    %69 = vector.extract_strided_slice %6 {offsets = [0, 88], sizes = [16, 8], strides = [1, 1]} : vector<16x192xf32> to vector<16x8xf32>
    %70 = vector.extract_strided_slice %6 {offsets = [0, 152], sizes = [16, 8], strides = [1, 1]} : vector<16x192xf32> to vector<16x8xf32>
    %cst_28 = arith.constant dense<0.000000e+00> : vector<16x16xf32>
    %71 = tpu.matmul %68, %69, %cst_28 {dimension_numbers = #tpu.dot_dimension_numbers<[1], [1], [0], [0], [0, 0, 1, 0], [], []>} : vector<16x8xf32>, vector<16x8xf32>, vector<16x16xf32> -> vector<16x16xf32>
    %cst_29 = arith.constant 0.353553385 : f32
    %72 = vector.broadcast %cst_29 : f32 to vector<16x16xf32>
    %73 = arith.mulf %71, %72 : vector<16x16xf32>
    %cst_30 = arith.constant dense<0xFF800000> : vector<16xf32>
    %74 = vector.multi_reduction <maximumf>, %73, %cst_30 [1] : vector<16x16xf32> to vector<16xf32>
    %75 = vector.shape_cast %74 : vector<16xf32> to vector<16x1xf32>
    %76 = vector.broadcast %75 : vector<16x1xf32> to vector<16x16xf32>
    %77 = arith.subf %73, %76 : vector<16x16xf32>
    %78 = math.exp %77 : vector<16x16xf32>
    %cst_31 = arith.constant dense<0.000000e+00> : vector<16xf32>
    %79 = vector.multi_reduction <add>, %78, %cst_31 [1] : vector<16x16xf32> to vector<16xf32>
    %80 = vector.shape_cast %79 : vector<16xf32> to vector<16x1xf32>
    %81 = vector.broadcast %80 : vector<16x1xf32> to vector<16x16xf32>
    %82 = arith.divf %78, %81 : vector<16x16xf32>
    %cst_32 = arith.constant dense<0.000000e+00> : vector<16x8xf32>
    %83 = tpu.matmul %82, %70, %cst_32 {dimension_numbers = #tpu.dot_dimension_numbers<[1], [0], [0], [1], [0, 0, 1, 1], [], []>} : vector<16x16xf32>, vector<16x8xf32>, vector<16x8xf32> -> vector<16x8xf32>
    %84 = vector.extract_strided_slice %7 {offsets = [24, 0], sizes = [8, 64], strides = [1, 1]} : vector<64x64xf32> to vector<8x64xf32>
    %cst_33 = arith.constant dense<0.000000e+00> : vector<16x64xf32>
    %85 = tpu.matmul %83, %84, %cst_33 {dimension_numbers = #tpu.dot_dimension_numbers<[1], [0], [0], [1], [0, 0, 1, 1], [], []>} : vector<16x8xf32>, vector<8x64xf32>, vector<16x64xf32> -> vector<16x64xf32>
    %86 = arith.addf %67, %85 : vector<16x64xf32>
    %87 = vector.extract_strided_slice %6 {offsets = [0, 32], sizes = [16, 8], strides = [1, 1]} : vector<16x192xf32> to vector<16x8xf32>
    %88 = vector.extract_strided_slice %6 {offsets = [0, 96], sizes = [16, 8], strides = [1, 1]} : vector<16x192xf32> to vector<16x8xf32>
    %89 = vector.extract_strided_slice %6 {offsets = [0, 160], sizes = [16, 8], strides = [1, 1]} : vector<16x192xf32> to vector<16x8xf32>
    %cst_34 = arith.constant dense<0.000000e+00> : vector<16x16xf32>
    %90 = tpu.matmul %87, %88, %cst_34 {dimension_numbers = #tpu.dot_dimension_numbers<[1], [1], [0], [0], [0, 0, 1, 0], [], []>} : vector<16x8xf32>, vector<16x8xf32>, vector<16x16xf32> -> vector<16x16xf32>
    %cst_35 = arith.constant 0.353553385 : f32
    %91 = vector.broadcast %cst_35 : f32 to vector<16x16xf32>
    %92 = arith.mulf %90, %91 : vector<16x16xf32>
    %cst_36 = arith.constant dense<0xFF800000> : vector<16xf32>
    %93 = vector.multi_reduction <maximumf>, %92, %cst_36 [1] : vector<16x16xf32> to vector<16xf32>
    %94 = vector.shape_cast %93 : vector<16xf32> to vector<16x1xf32>
    %95 = vector.broadcast %94 : vector<16x1xf32> to vector<16x16xf32>
    %96 = arith.subf %92, %95 : vector<16x16xf32>
    %97 = math.exp %96 : vector<16x16xf32>
    %cst_37 = arith.constant dense<0.000000e+00> : vector<16xf32>
    %98 = vector.multi_reduction <add>, %97, %cst_37 [1] : vector<16x16xf32> to vector<16xf32>
    %99 = vector.shape_cast %98 : vector<16xf32> to vector<16x1xf32>
    %100 = vector.broadcast %99 : vector<16x1xf32> to vector<16x16xf32>
    %101 = arith.divf %97, %100 : vector<16x16xf32>
    %cst_38 = arith.constant dense<0.000000e+00> : vector<16x8xf32>
    %102 = tpu.matmul %101, %89, %cst_38 {dimension_numbers = #tpu.dot_dimension_numbers<[1], [0], [0], [1], [0, 0, 1, 1], [], []>} : vector<16x16xf32>, vector<16x8xf32>, vector<16x8xf32> -> vector<16x8xf32>
    %103 = vector.extract_strided_slice %7 {offsets = [32, 0], sizes = [8, 64], strides = [1, 1]} : vector<64x64xf32> to vector<8x64xf32>
    %cst_39 = arith.constant dense<0.000000e+00> : vector<16x64xf32>
    %104 = tpu.matmul %102, %103, %cst_39 {dimension_numbers = #tpu.dot_dimension_numbers<[1], [0], [0], [1], [0, 0, 1, 1], [], []>} : vector<16x8xf32>, vector<8x64xf32>, vector<16x64xf32> -> vector<16x64xf32>
    %105 = arith.addf %86, %104 : vector<16x64xf32>
    %106 = vector.extract_strided_slice %6 {offsets = [0, 40], sizes = [16, 8], strides = [1, 1]} : vector<16x192xf32> to vector<16x8xf32>
    %107 = vector.extract_strided_slice %6 {offsets = [0, 104], sizes = [16, 8], strides = [1, 1]} : vector<16x192xf32> to vector<16x8xf32>
    %108 = vector.extract_strided_slice %6 {offsets = [0, 168], sizes = [16, 8], strides = [1, 1]} : vector<16x192xf32> to vector<16x8xf32>
    %cst_40 = arith.constant dense<0.000000e+00> : vector<16x16xf32>
    %109 = tpu.matmul %106, %107, %cst_40 {dimension_numbers = #tpu.dot_dimension_numbers<[1], [1], [0], [0], [0, 0, 1, 0], [], []>} : vector<16x8xf32>, vector<16x8xf32>, vector<16x16xf32> -> vector<16x16xf32>
    %cst_41 = arith.constant 0.353553385 : f32
    %110 = vector.broadcast %cst_41 : f32 to vector<16x16xf32>
    %111 = arith.mulf %109, %110 : vector<16x16xf32>
    %cst_42 = arith.constant dense<0xFF800000> : vector<16xf32>
    %112 = vector.multi_reduction <maximumf>, %111, %cst_42 [1] : vector<16x16xf32> to vector<16xf32>
    %113 = vector.shape_cast %112 : vector<16xf32> to vector<16x1xf32>
    %114 = vector.broadcast %113 : vector<16x1xf32> to vector<16x16xf32>
    %115 = arith.subf %111, %114 : vector<16x16xf32>
    %116 = math.exp %115 : vector<16x16xf32>
    %cst_43 = arith.constant dense<0.000000e+00> : vector<16xf32>
    %117 = vector.multi_reduction <add>, %116, %cst_43 [1] : vector<16x16xf32> to vector<16xf32>
    %118 = vector.shape_cast %117 : vector<16xf32> to vector<16x1xf32>
    %119 = vector.broadcast %118 : vector<16x1xf32> to vector<16x16xf32>
    %120 = arith.divf %116, %119 : vector<16x16xf32>
    %cst_44 = arith.constant dense<0.000000e+00> : vector<16x8xf32>
    %121 = tpu.matmul %120, %108, %cst_44 {dimension_numbers = #tpu.dot_dimension_numbers<[1], [0], [0], [1], [0, 0, 1, 1], [], []>} : vector<16x16xf32>, vector<16x8xf32>, vector<16x8xf32> -> vector<16x8xf32>
    %122 = vector.extract_strided_slice %7 {offsets = [40, 0], sizes = [8, 64], strides = [1, 1]} : vector<64x64xf32> to vector<8x64xf32>
    %cst_45 = arith.constant dense<0.000000e+00> : vector<16x64xf32>
    %123 = tpu.matmul %121, %122, %cst_45 {dimension_numbers = #tpu.dot_dimension_numbers<[1], [0], [0], [1], [0, 0, 1, 1], [], []>} : vector<16x8xf32>, vector<8x64xf32>, vector<16x64xf32> -> vector<16x64xf32>
    %124 = arith.addf %105, %123 : vector<16x64xf32>
    %125 = vector.extract_strided_slice %6 {offsets = [0, 48], sizes = [16, 8], strides = [1, 1]} : vector<16x192xf32> to vector<16x8xf32>
    %126 = vector.extract_strided_slice %6 {offsets = [0, 112], sizes = [16, 8], strides = [1, 1]} : vector<16x192xf32> to vector<16x8xf32>
    %127 = vector.extract_strided_slice %6 {offsets = [0, 176], sizes = [16, 8], strides = [1, 1]} : vector<16x192xf32> to vector<16x8xf32>
    %cst_46 = arith.constant dense<0.000000e+00> : vector<16x16xf32>
    %128 = tpu.matmul %125, %126, %cst_46 {dimension_numbers = #tpu.dot_dimension_numbers<[1], [1], [0], [0], [0, 0, 1, 0], [], []>} : vector<16x8xf32>, vector<16x8xf32>, vector<16x16xf32> -> vector<16x16xf32>
    %cst_47 = arith.constant 0.353553385 : f32
    %129 = vector.broadcast %cst_47 : f32 to vector<16x16xf32>
    %130 = arith.mulf %128, %129 : vector<16x16xf32>
    %cst_48 = arith.constant dense<0xFF800000> : vector<16xf32>
    %131 = vector.multi_reduction <maximumf>, %130, %cst_48 [1] : vector<16x16xf32> to vector<16xf32>
    %132 = vector.shape_cast %131 : vector<16xf32> to vector<16x1xf32>
    %133 = vector.broadcast %132 : vector<16x1xf32> to vector<16x16xf32>
    %134 = arith.subf %130, %133 : vector<16x16xf32>
    %135 = math.exp %134 : vector<16x16xf32>
    %cst_49 = arith.constant dense<0.000000e+00> : vector<16xf32>
    %136 = vector.multi_reduction <add>, %135, %cst_49 [1] : vector<16x16xf32> to vector<16xf32>
    %137 = vector.shape_cast %136 : vector<16xf32> to vector<16x1xf32>
    %138 = vector.broadcast %137 : vector<16x1xf32> to vector<16x16xf32>
    %139 = arith.divf %135, %138 : vector<16x16xf32>
    %cst_50 = arith.constant dense<0.000000e+00> : vector<16x8xf32>
    %140 = tpu.matmul %139, %127, %cst_50 {dimension_numbers = #tpu.dot_dimension_numbers<[1], [0], [0], [1], [0, 0, 1, 1], [], []>} : vector<16x16xf32>, vector<16x8xf32>, vector<16x8xf32> -> vector<16x8xf32>
    %141 = vector.extract_strided_slice %7 {offsets = [48, 0], sizes = [8, 64], strides = [1, 1]} : vector<64x64xf32> to vector<8x64xf32>
    %cst_51 = arith.constant dense<0.000000e+00> : vector<16x64xf32>
    %142 = tpu.matmul %140, %141, %cst_51 {dimension_numbers = #tpu.dot_dimension_numbers<[1], [0], [0], [1], [0, 0, 1, 1], [], []>} : vector<16x8xf32>, vector<8x64xf32>, vector<16x64xf32> -> vector<16x64xf32>
    %143 = arith.addf %124, %142 : vector<16x64xf32>
    %144 = vector.extract_strided_slice %6 {offsets = [0, 56], sizes = [16, 8], strides = [1, 1]} : vector<16x192xf32> to vector<16x8xf32>
    %145 = vector.extract_strided_slice %6 {offsets = [0, 120], sizes = [16, 8], strides = [1, 1]} : vector<16x192xf32> to vector<16x8xf32>
    %146 = vector.extract_strided_slice %6 {offsets = [0, 184], sizes = [16, 8], strides = [1, 1]} : vector<16x192xf32> to vector<16x8xf32>
    %cst_52 = arith.constant dense<0.000000e+00> : vector<16x16xf32>
    %147 = tpu.matmul %144, %145, %cst_52 {dimension_numbers = #tpu.dot_dimension_numbers<[1], [1], [0], [0], [0, 0, 1, 0], [], []>} : vector<16x8xf32>, vector<16x8xf32>, vector<16x16xf32> -> vector<16x16xf32>
    %cst_53 = arith.constant 0.353553385 : f32
    %148 = vector.broadcast %cst_53 : f32 to vector<16x16xf32>
    %149 = arith.mulf %147, %148 : vector<16x16xf32>
    %cst_54 = arith.constant dense<0xFF800000> : vector<16xf32>
    %150 = vector.multi_reduction <maximumf>, %149, %cst_54 [1] : vector<16x16xf32> to vector<16xf32>
    %151 = vector.shape_cast %150 : vector<16xf32> to vector<16x1xf32>
    %152 = vector.broadcast %151 : vector<16x1xf32> to vector<16x16xf32>
    %153 = arith.subf %149, %152 : vector<16x16xf32>
    %154 = math.exp %153 : vector<16x16xf32>
    %cst_55 = arith.constant dense<0.000000e+00> : vector<16xf32>
    %155 = vector.multi_reduction <add>, %154, %cst_55 [1] : vector<16x16xf32> to vector<16xf32>
    %156 = vector.shape_cast %155 : vector<16xf32> to vector<16x1xf32>
    %157 = vector.broadcast %156 : vector<16x1xf32> to vector<16x16xf32>
    %158 = arith.divf %154, %157 : vector<16x16xf32>
    %cst_56 = arith.constant dense<0.000000e+00> : vector<16x8xf32>
    %159 = tpu.matmul %158, %146, %cst_56 {dimension_numbers = #tpu.dot_dimension_numbers<[1], [0], [0], [1], [0, 0, 1, 1], [], []>} : vector<16x16xf32>, vector<16x8xf32>, vector<16x8xf32> -> vector<16x8xf32>
    %160 = vector.extract_strided_slice %7 {offsets = [56, 0], sizes = [8, 64], strides = [1, 1]} : vector<64x64xf32> to vector<8x64xf32>
    %cst_57 = arith.constant dense<0.000000e+00> : vector<16x64xf32>
    %161 = tpu.matmul %159, %160, %cst_57 {dimension_numbers = #tpu.dot_dimension_numbers<[1], [0], [0], [1], [0, 0, 1, 1], [], []>} : vector<16x8xf32>, vector<8x64xf32>, vector<16x64xf32> -> vector<16x64xf32>
    %162 = arith.addf %143, %161 : vector<16x64xf32>
    %c0_58 = arith.constant 0 : index
    %c0_59 = arith.constant 0 : index
    %c0_60 = arith.constant 0 : index
    %163 = vector.load %arg6[%c0_58, %c0_59, %c0_60] : memref<1x16x64xf32, #tpu.memory_space<vmem>>, vector<1x16x64xf32>
    %164 = vector.shape_cast %163 : vector<1x16x64xf32> to vector<16x64xf32>
    %165 = vector.shape_cast %162 : vector<16x64xf32> to vector<1x16x64xf32>
    tpu.vector_store %arg6[%c0_58, %c0_59, %c0_60], %165 {strides = array<i32>} : memref<1x16x64xf32, #tpu.memory_space<vmem>>, vector<1x16x64xf32>,
    return
  }
  func.func @transform_0(%arg0: i32) -> (i32, i32, i32) {
    %c0_i32 = arith.constant 0 : i32
    %c0_i32_0 = arith.constant 0 : i32
    %c0_i32_1 = arith.constant 0 : i32
    return %arg0, %c0_i32, %c0_i32_0 : i32, i32, i32
  }
  func.func @transform_1(%arg0: i32) -> (i32, i32) {
    %c0_i32 = arith.constant 0 : i32
    %c0_i32_0 = arith.constant 0 : i32
    %c0_i32_1 = arith.constant 0 : i32
    return %c0_i32, %c0_i32_0 : i32, i32
  }
  func.func @transform_2(%arg0: i32) -> (i32, i32) {
    %c0_i32 = arith.constant 0 : i32
    %c0_i32_0 = arith.constant 0 : i32
    %c0_i32_1 = arith.constant 0 : i32
    return %c0_i32, %c0_i32_0 : i32, i32
  }
  func.func @transform_3(%arg0: i32) -> (i32, i32) {
    %c0_i32 = arith.constant 0 : i32
    %c0_i32_0 = arith.constant 0 : i32
    %c0_i32_1 = arith.constant 0 : i32
    return %c0_i32, %c0_i32_0 : i32, i32
  }
  func.func @transform_4(%arg0: i32) -> (i32, i32) {
    %c0_i32 = arith.constant 0 : i32
    %c0_i32_0 = arith.constant 0 : i32
    %c0_i32_1 = arith.constant 0 : i32
    return %c0_i32, %c0_i32_0 : i32, i32
  }
  func.func @transform_5(%arg0: i32) -> (i32, i32, i32) {
    %c0_i32 = arith.constant 0 : i32
    %c0_i32_0 = arith.constant 0 : i32
    %c0_i32_1 = arith.constant 0 : i32
    return %arg0, %c0_i32, %c0_i32_0 : i32, i32, i32
  }
}

</mosaic_0001>

<llo_original>
// kernel: tpu_custom_call.1
$region0: #{tpu_custom_call.1}
  #allocation0 [shape = 'u32[]', space=smem, size = 0x4, offset = 0x4, fixed_abs, tag = 'smem constant byte address 0x4 - core index']
  #allocation1 [shape = 'u32[72,128]{1,0:T(1,128)}', space=vmem, size = 0x9000, scoped, tag = 'internal scratch']
  %s0 = inlined_call_operand.hbm [shape: f32[2,16,64], index: 0, kind: input, shape index: {}]
  %s1 = inlined_call_operand.hbm [shape: f32[64,192], index: 1, kind: input, shape index: {}]
  %s2 = inlined_call_operand.hbm [shape: f32[1,192], index: 2, kind: input, shape index: {}]
  %s3 = inlined_call_operand.hbm [shape: f32[64,64], index: 3, kind: input, shape index: {}]
  %s4 = inlined_call_operand.vmem [shape: f32[1,64], index: 4, kind: input, shape index: {}]
  %s5 = inlined_call_operand.hbm [shape: f32[2,16,64], index: 5, kind: output, shape index: {}]
  %s6 = sld [smem:[#allocation0]]
  $region69: #{tpu_custom_call.1} parent=0
    _
  %s8 = ssub.s32 1, %s6
  %s9 = scalar_select 0, %s8, %s6
  $region1: #{tpu_custom_call.1} parent=0
    #allocation2 [shape = 'u8[16384]{0}', space=vmem, size = 0x4000, scoped, tag = 'input window, operand 0']
    #allocation3 [shape = 's32[2]{0}', space=sflag, size = 0x8, scoped, tag = 'scoped memory for tpu_custom_call.1']
    #allocation4 [shape = 's32[2]{0}', space=sflag, size = 0x8, scoped, tag = 'scoped memory for tpu_custom_call.1']
    #allocation5 [shape = 'u8[65536]{0}', space=vmem, size = 0x10000, scoped, tag = 'input window, operand 1, single buffered']
    #allocation6 [shape = 's32[1]{0}', space=sflag, size = 0x4, scoped, tag = 'scoped memory for tpu_custom_call.1']
    #allocation7 [shape = 'u8[1024]{0}', space=vmem, size = 0x400, scoped, tag = 'input window, operand 2, single buffered']
    #allocation8 [shape = 'u8[32768]{0}', space=vmem, size = 0x8000, scoped, tag = 'input window, operand 3, single buffered']
    #allocation9 [shape = 's32[1]{0}', space=sflag, size = 0x4, scoped, tag = 'scoped memory for tpu_custom_call.1']
    #allocation10 [shape = 'u8[16384]{0}', space=vmem, size = 0x4000, scoped, tag = 'output window, operand 0']
    %10 = vsyncpa [#allocation3], 0
    %s11 = scalar_lea.sflag [#allocation3], 1
    %12 = vsyncpa %s11, 0
    %13 = vsyncpa [#allocation6], 0
    %14 = vsyncpa [#allocation9], 0
    %15 = vsyncpa [#allocation4], 0
    %s16 = scalar_lea.sflag [#allocation4], 1
    %17 = vsyncpa %s16, 0
    loop: start=0, step=1, limit=4
    $region2: #{tpu_custom_call.1} parent=1 // loop_pre_header
      _
    $region3: #{tpu_custom_call.1} parent=1 // loop_header
      %s19 = sphi 0, %s23
      %p20 = scmp.ge.s32.totalorder %s19, 4
      %s29 = sphi 0, %s31
      %s32 = sphi 0, %s29
      %s33 = sphi 0, %s32
      %s49 = sphi 0, %s33
      %s53 = sphi 0, %s53
      %s55 = sphi 0, %s53
      %s56 = sphi 0, %s55
      %s70 = sphi 0, %s56
      %s74 = sphi 0, %s74
      %s76 = sphi 0, %s74
      %s77 = sphi 0, %s76
      %s91 = sphi 0, %s77
      %s95 = sphi 0, %s95
      %s97 = sphi 0, %s95
      %s98 = sphi 0, %s97
      %s112 = sphi 0, %s98
      %s116 = sphi 0, %s116
      %s118 = sphi 0, %s116
      %s119 = sphi 0, %s118
      %s133 = sphi 0, %s119
      %s139 = sphi 0, %s141
      %s142 = sphi 0, %s139
      %s143 = sphi 0, %s142
      %s159 = sphi 0, %s143
    $region4: #{tpu_custom_call.1} parent=1 // loop_header_branch
      %22 = sbr.rel (%p20) target = $region8
    $region5: #{tpu_custom_call.1} parent=1 // loop_body
      %s24 = ssub.s32 %s19, 1
      %s25 = ssub.s32 %s19, 2
      %s26 = sadd.s32 %s19, 1
      %s27 = ssub.s32 %s19, %s26
      %p28 = scmp.eq.s32.totalorder %s27, 0
      %s30 = sadd.s32 %s29, 1
      %s31 = scalar_select %p28, %s29, %s30
      %p34 = pneg %p28
      %p35 = scmp.eq.s32.totalorder %s19, 1
      %p36 = por %p34, %p35
      %p37 = scmp.ne.s32.totalorder %s29, %s32
      %p38 = scmp.eq.s32.totalorder %s19, 0
      %p39 = por %p37, %p38
      %p40 = scmp.ne.s32.totalorder %s29, %s32
      %p41 = scmp.eq.s32.totalorder %s24, 1
      %p42 = por %p40, %p41
      %p43 = scmp.ne.s32.totalorder %s32, %s33
      %p44 = scmp.eq.s32.totalorder %s24, 0
      %p45 = por %p43, %p44
      %p46 = scmp.ne.s32.totalorder %s32, %s33
      %p47 = scmp.eq.s32.totalorder %s25, 1
      %p48 = por %p46, %p47
      %p50 = scmp.ne.s32.totalorder %s33, %s49
      %p51 = scmp.eq.s32.totalorder %s25, 0
      %p52 = por %p50, %p51
      %s54 = sadd.s32 %s53, 1
      %p57 = scmp.eq.s32.totalorder %s19, 1
      %p58 = scmp.ne.s32.totalorder %s53, %s55
      %p59 = scmp.eq.s32.totalorder %s19, 0
      %p60 = por %p58, %p59
      %p61 = scmp.ne.s32.totalorder %s53, %s55
      %p62 = scmp.eq.s32.totalorder %s24, 1
      %p63 = por %p61, %p62
      %p64 = scmp.ne.s32.totalorder %s55, %s56
      %p65 = scmp.eq.s32.totalorder %s24, 0
      %p66 = por %p64, %p65
      %p67 = scmp.ne.s32.totalorder %s55, %s56
      %p68 = scmp.eq.s32.totalorder %s25, 1
      %p69 = por %p67, %p68
      %p71 = scmp.ne.s32.totalorder %s56, %s70
      %p72 = scmp.eq.s32.totalorder %s25, 0
      %p73 = por %p71, %p72
      %s75 = sadd.s32 %s74, 1
      %p78 = scmp.eq.s32.totalorder %s19, 1
      %p79 = scmp.ne.s32.totalorder %s74, %s76
      %p80 = scmp.eq.s32.totalorder %s19, 0
      %p81 = por %p79, %p80
      %p82 = scmp.ne.s32.totalorder %s74, %s76
      %p83 = scmp.eq.s32.totalorder %s24, 1
      %p84 = por %p82, %p83
      %p85 = scmp.ne.s32.totalorder %s76, %s77
      %p86 = scmp.eq.s32.totalorder %s24, 0
      %p87 = por %p85, %p86
      %p88 = scmp.ne.s32.totalorder %s76, %s77
      %p89 = scmp.eq.s32.totalorder %s25, 1
      %p90 = por %p88, %p89
      %p92 = scmp.ne.s32.totalorder %s77, %s91
      %p93 = scmp.eq.s32.totalorder %s25, 0
      %p94 = por %p92, %p93
      %s96 = sadd.s32 %s95, 1
      %p99 = scmp.eq.s32.totalorder %s19, 1
      %p100 = scmp.ne.s32.totalorder %s95, %s97
      %p101 = scmp.eq.s32.totalorder %s19, 0
      %p102 = por %p100, %p101
      %p103 = scmp.ne.s32.totalorder %s95, %s97
      %p104 = scmp.eq.s32.totalorder %s24, 1
      %p105 = por %p103, %p104
      %p106 = scmp.ne.s32.totalorder %s97, %s98
      %p107 = scmp.eq.s32.totalorder %s24, 0
      %p108 = por %p106, %p107
      %p109 = scmp.ne.s32.totalorder %s97, %s98
      %p110 = scmp.eq.s32.totalorder %s25, 1
      %p111 = por %p109, %p110
      %p113 = scmp.ne.s32.totalorder %s98, %s112
      %p114 = scmp.eq.s32.totalorder %s25, 0
      %p115 = por %p113, %p114
      %s117 = sadd.s32 %s116, 1
      %p120 = scmp.eq.s32.totalorder %s19, 1
      %p121 = scmp.ne.s32.totalorder %s116, %s118
      %p122 = scmp.eq.s32.totalorder %s19, 0
      %p123 = por %p121, %p122
      %p124 = scmp.ne.s32.totalorder %s116, %s118
      %p125 = scmp.eq.s32.totalorder %s24, 1
      %p126 = por %p124, %p125
      %p127 = scmp.ne.s32.totalorder %s118, %s119
      %p128 = scmp.eq.s32.totalorder %s24, 0
      %p129 = por %p127, %p128
      %p130 = scmp.ne.s32.totalorder %s118, %s119
      %p131 = scmp.eq.s32.totalorder %s25, 1
      %p132 = por %p130, %p131
      %p134 = scmp.ne.s32.totalorder %s119, %s133
      %p135 = scmp.eq.s32.totalorder %s25, 0
      %p136 = por %p134, %p135
      %s137 = ssub.s32 %s19, %s26
      %p138 = scmp.eq.s32.totalorder %s137, 0
      %s140 = sadd.s32 %s139, 1
      %s141 = scalar_select %p138, %s139, %s140
      %p144 = pneg %p138
      %p145 = scmp.eq.s32.totalorder %s19, 1
      %p146 = por %p144, %p145
      %p147 = scmp.ne.s32.totalorder %s139, %s142
      %p148 = scmp.eq.s32.totalorder %s19, 0
      %p149 = por %p147, %p148
      %p150 = scmp.ne.s32.totalorder %s139, %s142
      %p151 = scmp.eq.s32.totalorder %s24, 1
      %p152 = por %p150, %p151
      %p153 = scmp.ne.s32.totalorder %s142, %s143
      %p154 = scmp.eq.s32.totalorder %s24, 0
      %p155 = por %p153, %p154
      %p156 = scmp.ne.s32.totalorder %s142, %s143
      %p157 = scmp.eq.s32.totalorder %s25, 1
      %p158 = por %p156, %p157
      %p160 = scmp.ne.s32.totalorder %s143, %s159
      %p161 = scmp.eq.s32.totalorder %s25, 0
      %p162 = por %p160, %p161
      %p163 = scmp.le.s32.totalorder 1, %s19
      %p164 = scmp.lt.s32.totalorder %s19, 3
      %p165 = pnand %p163, %p164
      %p166 = pneg %p165
      // Predicated region
      $region9: #{tpu_custom_call.1} parent=5 // pred_check
        _
      $region10: #{tpu_custom_call.1} parent=5 // pred_check_branch
        %168 = sbr.rel (%p165) target = $region12
      $region11: #{tpu_custom_call.1} parent=5 // pred_region
        %s169 = ssub.s32 %s19, 1
        // Predicated region
        $region13: #{tpu_custom_call.1} parent=11 // pred_check
          %p170 = pneg %p66
        $region14: #{tpu_custom_call.1} parent=11 // pred_check_branch
          %172 = sbr.rel (%p170) target = $region16
        $region15: #{tpu_custom_call.1} parent=11 // pred_region
          %174 = vsyncadd [#allocation6], 0
          %s175 = sshll.u32 %s1, 4
          %s176 = int_to_ptr.hbm [resolvable:$true] %s175
          %s177 = sshll.u32 [#allocation5], 4
          %s178 = int_to_ptr.vmem [resolvable:$true] %s177
          %183 = dma.hbm_to_vmem [thread:$0]  %s176, 2048, %s178, [#allocation6], 256, 256, 16
        $region16: #{tpu_custom_call.1} parent=11 // pred_fallthru
          _
        // Predicated region
        $region17: #{tpu_custom_call.1} parent=11 // pred_check
          %p184 = pneg %p87
        $region18: #{tpu_custom_call.1} parent=11 // pred_check_branch
          %186 = sbr.rel (%p184) target = $region20
        $region19: #{tpu_custom_call.1} parent=11 // pred_region
          %188 = vsyncadd [#allocation6], 0
          %s190 = sshll.u32 %s2, 4
          %s191 = int_to_ptr.hbm [resolvable:$true] %s190
          %s192 = sshll.u32 [#allocation7], 4
          %s193 = int_to_ptr.vmem [resolvable:$true] %s192
          %195 = dma.hbm_to_vmem [thread:$0]  %s191, 32, %s193, [#allocation6]
        $region20: #{tpu_custom_call.1} parent=11 // pred_fallthru
          _
        // Predicated region
        $region21: #{tpu_custom_call.1} parent=11 // pred_check
          %p196 = pneg %p108
        $region22: #{tpu_custom_call.1} parent=11 // pred_check_branch
          %198 = sbr.rel (%p196) target = $region24
        $region23: #{tpu_custom_call.1} parent=11 // pred_region
          %200 = vsyncadd [#allocation9], 0
          %s201 = sshll.u32 %s3, 4
          %s202 = int_to_ptr.hbm [resolvable:$true] %s201
          %s203 = sshll.u32 [#allocation8], 4
          %s204 = int_to_ptr.vmem [resolvable:$true] %s203
          %209 = dma.hbm_to_vmem [thread:$0]  %s202, 1024, %s204, [#allocation9], 128, 128, 8
        $region24: #{tpu_custom_call.1} parent=11 // pred_fallthru
          _
        // Predicated region
        $region25: #{tpu_custom_call.1} parent=11 // pred_check
          %p210 = pneg %p129
        $region26: #{tpu_custom_call.1} parent=11 // pred_check_branch
          %212 = sbr.rel (%p210) target = $region28
        $region27: #{tpu_custom_call.1} parent=11 // pred_region
          _
        $region28: #{tpu_custom_call.1} parent=11 // pred_fallthru
          _
      $region12: #{tpu_custom_call.1} parent=5 // pred_fallthru
        _
      %p213 = scmp.lt.s32.totalorder %s19, 2
      // Predicated region
      $region29: #{tpu_custom_call.1} parent=5 // pred_check
        %p214 = pneg %p213
      $region30: #{tpu_custom_call.1} parent=5 // pred_check_branch
        %216 = sbr.rel (%p214) target = $region32
      $region31: #{tpu_custom_call.1} parent=5 // pred_region
        // Predicated region
        $region33: #{tpu_custom_call.1} parent=31 // pred_check
          %p217 = pneg %p39
        $region34: #{tpu_custom_call.1} parent=31 // pred_check_branch
          %219 = sbr.rel (%p217) target = $region36
        $region35: #{tpu_custom_call.1} parent=31 // pred_region
          %s220 = sand.u32 %s29, 1
          %s221 = scalar_lea.sflag [#allocation3], %s220
          %s222 = sand.u32 %s29, 1
          %s223 = smul.addr %s222, 16
          %s224 = scalar_lea.vmem [#allocation2], %s223
          %226 = vsyncadd %s221, 0
          %s227 = smul.addr %s19, 2
          %s228 = smul.addr %s227, 8
          %s229 = scalar_lea.hbm %s0, %s228
          %s230 = sshll.u32 %s229, 4
          %s231 = int_to_ptr.hbm [resolvable:$true] %s230
          %s232 = sshll.u32 %s224, 4
          %s233 = int_to_ptr.vmem [resolvable:$true] %s232
          %238 = dma.hbm_to_vmem [thread:$0]  %s231, 256, %s233, %s221, 128, 128, 8
        $region36: #{tpu_custom_call.1} parent=31 // pred_fallthru
          _
      $region32: #{tpu_custom_call.1} parent=5 // pred_fallthru
        _
      %p239 = scmp.le.s32.totalorder 1, %s19
      %p240 = scmp.lt.s32.totalorder %s19, 3
      %p241 = pnand %p239, %p240
      %p242 = pneg %p241
      // Predicated region
      $region37: #{tpu_custom_call.1} parent=5 // pred_check
        _
      $region38: #{tpu_custom_call.1} parent=5 // pred_check_branch
        %244 = sbr.rel (%p241) target = $region40
      $region39: #{tpu_custom_call.1} parent=5 // pred_region
        %s245 = ssub.s32 %s19, 1
        %s246 = sand.u32 %s32, 1
        %s247 = scalar_lea.sflag [#allocation3], %s246
        %s248 = sand.u32 %s32, 1
        %s249 = smul.addr %s248, 16
        %s250 = scalar_lea.vmem [#allocation2], %s249
        // Predicated region
        $region41: #{tpu_custom_call.1} parent=39 // pred_check
          %p251 = pneg %p45
        $region42: #{tpu_custom_call.1} parent=39 // pred_check_branch
          %253 = sbr.rel (%p251) target = $region44
        $region43: #{tpu_custom_call.1} parent=39 // pred_region
          %255 = dma.done %s247, 256
        $region44: #{tpu_custom_call.1} parent=39 // pred_fallthru
          _
        // Predicated region
        $region45: #{tpu_custom_call.1} parent=39 // pred_check
          %p256 = pneg %p66
        $region46: #{tpu_custom_call.1} parent=39 // pred_check_branch
          %258 = sbr.rel (%p256) target = $region48
        $region47: #{tpu_custom_call.1} parent=39 // pred_region
          %260 = dma.done [#allocation6], 2048
        $region48: #{tpu_custom_call.1} parent=39 // pred_fallthru
          _
        // Predicated region
        $region49: #{tpu_custom_call.1} parent=39 // pred_check
          %p261 = pneg %p87
        $region50: #{tpu_custom_call.1} parent=39 // pred_check_branch
          %263 = sbr.rel (%p261) target = $region52
        $region51: #{tpu_custom_call.1} parent=39 // pred_region
          %265 = dma.done [#allocation6], 32
        $region52: #{tpu_custom_call.1} parent=39 // pred_fallthru
          _
        // Predicated region
        $region53: #{tpu_custom_call.1} parent=39 // pred_check
          %p266 = pneg %p108
        $region54: #{tpu_custom_call.1} parent=39 // pred_check_branch
          %268 = sbr.rel (%p266) target = $region56
        $region55: #{tpu_custom_call.1} parent=39 // pred_region
          %270 = dma.done [#allocation9], 1024
        $region56: #{tpu_custom_call.1} parent=39 // pred_fallthru
          _
        %s271 = sand.u32 %s32, 1
        %s272 = scalar_lea.sflag [#allocation3], %s271
        %s273 = sand.u32 %s32, 1
        %s274 = smul.addr %s273, 16
        %s275 = scalar_lea.vmem [#allocation2], %s274
        %p276 = pneg %p45
        %p277 = pneg %p42
        %p278 = pneg %p66
        %p279 = pneg %p63
        %p280 = pneg %p87
        %p281 = pneg %p84
        %p282 = pneg %p108
        %p283 = pneg %p105
        %p284 = pneg %p129
        %p285 = pneg %p126
        %p286 = pneg %p155
        %p287 = pneg %p152
        %s288 = sand.u32 %s142, 1
        %s289 = scalar_lea.sflag [#allocation4], %s288
        %s290 = sand.u32 %s142, 1
        %s291 = smul.addr %s290, 16
        %s292 = scalar_lea.vmem [#allocation10], %s291
        %v293 = vld [vmem:[%s250] sm:$0xff]
        %v294 = vld [vmem:[%s250 + $0x8] sm:$0xff]
        %v295 = vld [vmem:[#allocation5] sm:$0xff]
        %v296 = vld [vmem:[#allocation5 + $0x8] sm:$0xff]
        %v297 = vld [vmem:[#allocation5 + $0x10] sm:$0xff]
        %v298 = vld [vmem:[#allocation5 + $0x18] sm:$0xff]
        %v299 = vld [vmem:[#allocation5 + $0x20] sm:$0xff]
        %v300 = vld [vmem:[#allocation5 + $0x28] sm:$0xff]
        %v301 = vld [vmem:[#allocation5 + $0x30] sm:$0xff]
        %v302 = vld [vmem:[#allocation5 + $0x38] sm:$0xff]
        %v303 = vld [vmem:[#allocation5 + $0x40] sm:$0xff]
        %v304 = vld [vmem:[#allocation5 + $0x48] sm:$0xff]
        %v305 = vld [vmem:[#allocation5 + $0x50] sm:$0xff]
        %v306 = vld [vmem:[#allocation5 + $0x58] sm:$0xff]
        %v307 = vld [vmem:[#allocation5 + $0x60] sm:$0xff]
        %v308 = vld [vmem:[#allocation5 + $0x68] sm:$0xff]
        %v309 = vld [vmem:[#allocation5 + $0x70] sm:$0xff]
        %v310 = vld [vmem:[#allocation5 + $0x78] sm:$0xff]
        %v311 = vld [vmem:[#allocation7] sm:$0x3]
        %v313 = vperm.slane %v311, 0
        %v314 = vperm.slane %v311, 1
        %vm317 = vcmask 523264
        %v319 = vsel %vm317, %v293, 0
        %v322 = vsel %vm317, %v294, 0
        %324 = vmatpush.msra.mxu0 0.0
        %325 = vmatpush.msra.mxu0 0.0
        %326 = vmatpush.msra.mxu0 0.0
        %327 = vmatpush.msra.mxu0 0.0
        %328 = vmatpush.msra.mxu0 0.0
        %329 = vmatpush.msra.mxu0 0.0
        %330 = vmatpush.msra.mxu0 0.0
        %331 = vmatpush.msra.mxu0 0.0
        %332 = vmatpush.msra.mxu0 %v309
        %333 = vmatpush.msra.mxu0 %v307
        %334 = vmatpush.msra.mxu0 %v305
        %335 = vmatpush.msra.mxu0 %v303
        %336 = vmatpush.msra.mxu0 %v301
        %337 = vmatpush.msra.mxu0 %v299
        %338 = vmatpush.msra.mxu0 %v297
        %339 = vmatpush.msra.mxu0 %v295
        %340 = vmatmul.f32.gmra.mxu0 %v319
        %v341 = vpop.f32.mrf.mxu0
        %v342 = vadd.f32 %v313, %v341
        %343 = vmatmul.f32.gmra.mxu0 %v322
        %v344 = vpop.f32.mrf.mxu0
        %v345 = vadd.f32 %v313, %v344
        %346 = vdwg.mxu0
        %347 = vmatpush.msra.mxu0 0.0
        %348 = vmatpush.msra.mxu0 0.0
        %349 = vmatpush.msra.mxu0 0.0
        %350 = vmatpush.msra.mxu0 0.0
        %351 = vmatpush.msra.mxu0 0.0
        %352 = vmatpush.msra.mxu0 0.0
        %353 = vmatpush.msra.mxu0 0.0
        %354 = vmatpush.msra.mxu0 0.0
        %355 = vmatpush.msra.mxu0 %v310
        %356 = vmatpush.msra.mxu0 %v308
        %357 = vmatpush.msra.mxu0 %v306
        %358 = vmatpush.msra.mxu0 %v304
        %359 = vmatpush.msra.mxu0 %v302
        %360 = vmatpush.msra.mxu0 %v300
        %361 = vmatpush.msra.mxu0 %v298
        %362 = vmatpush.msra.mxu0 %v296
        %363 = vmatmul.f32.gmra.mxu0 %v319
        %v364 = vpop.f32.mrf.mxu0
        %v365 = vadd.f32 %v314, %v364
        %366 = vmatmul.f32.gmra.mxu0 %v322
        %v367 = vpop.f32.mrf.mxu0
        %v368 = vadd.f32 %v314, %v367
        %369 = vdwg.mxu0
        %v370 = vld [vmem:[#allocation8] sm:$0xff]
        %v371 = vld [vmem:[#allocation8 + $0x8] sm:$0xff]
        %v372 = vld [vmem:[#allocation8 + $0x10] sm:$0xff]
        %v373 = vld [vmem:[#allocation8 + $0x18] sm:$0xff]
        %v374 = vld [vmem:[#allocation8 + $0x20] sm:$0xff]
        %v375 = vld [vmem:[#allocation8 + $0x28] sm:$0xff]
        %v376 = vld [vmem:[#allocation8 + $0x30] sm:$0xff]
        %v377 = vld [vmem:[#allocation8 + $0x38] sm:$0xff]
        %v378 = vld [vmem:[%s4] sm:$0x1]
        %v380 = vperm.slane %v378, 0
        %384 = vrot.lane.b32.xlu0 %v342, 64
        %v385 = vpop.permute.xlu0 %384
        %386 = vrot.lane.b32.xlu0 %v345, 64
        %v387 = vpop.permute.xlu0 %386
        %vm388 = vcmask 64512
        %v389 = vsel %vm388, %v342, 0
        %v391 = vsel %vm388, %v345, 0
        %v393 = vsel %vm388, %v385, 0
        %v395 = vsel %vm388, %v387, 0
        %397 = vmatpush.xpose.msra.mxu0 0.0
        %398 = vmatpush.xpose.msra.mxu0 0.0
        %399 = vmatpush.xpose.msra.mxu0 0.0
        %400 = vmatpush.xpose.msra.mxu0 0.0
        %401 = vmatpush.xpose.msra.mxu0 0.0
        %402 = vmatpush.xpose.msra.mxu0 0.0
        %403 = vmatpush.xpose.msra.mxu0 0.0
        %404 = vmatpush.xpose.msra.mxu0 0.0
        %405 = vmatpush.xpose.msra.mxu0 0.0
        %406 = vmatpush.xpose.msra.mxu0 0.0
        %407 = vmatpush.xpose.msra.mxu0 0.0
        %408 = vmatpush.xpose.msra.mxu0 0.0
        %409 = vmatpush.xpose.msra.mxu0 0.0
        %410 = vmatpush.xpose.msra.mxu0 0.0
        %411 = vmatpush.xpose.msra.mxu0 %v395
        %412 = vmatpush.xpose.msra.mxu0 %v393
        %413 = vmatmul.f32.gmra.mxu0 %v389
        %v414 = vpop.f32.mrf.mxu0
        %v415 = vadd.f32 0.0, %v414
        %416 = vmatmul.f32.gmra.mxu0 %v391
        %v417 = vpop.f32.mrf.mxu0
        %v418 = vadd.f32 0.0, %v417
        %419 = vdwg.mxu0
        %v420 = vmul.f32 %v415, 0.35355338
        %v421 = vmul.f32 %v418, 0.35355338
        %vm422 = vcmask 130048
        %v423 = vsel %vm422, %v420, -inf
        %424 = vmax.xlane.f32.xlu0 %v423
        %v425 = vpop.xlane.xlu0 %424
        %v426 = vsel %vm422, %v421, -inf
        %427 = vmax.xlane.f32.xlu0 %v426
        %v428 = vpop.xlane.xlu0 %427
        %v429 = vsub.f32 %v420, %v425
        %v430 = vsub.f32 %v421, %v428
        %v431 = vmul.f32 %v429, 1.442695
        %v432 = vpow.pop %v431
        %v433 = vmul.f32 %v430, 1.442695
        %v434 = vpow.pop %v433
        %v435 = vsel %vm422, %v432, 0.0
        %436 = vadd.xlane.f32.xlu0 %v435
        %v437 = vpop.xlane.xlu0 %436
        %v438 = vsel %vm422, %v434, 0.0
        %439 = vadd.xlane.f32.xlu0 %v438
        %v440 = vpop.xlane.xlu0 %439
        %v441 = vrcp.pop %v437
        %v442 = vmul.f32 %v437, %v441
        %v443 = vsub.f32 1.0, %v442
        %v444 = vmul.f32 %v441, %v443
        %v445 = vadd.f32 %v441, %v444
        %vm446 = vweird.f32 %v437
        %vm447 = vweird.f32 %v441
        %vm448 = vmor %vm446, %vm447
        %v449 = vsel %vm448, %v441, %v445
        %v450 = vand.u32 2147483647, %v437
        %vm451 = vcmp.eq.f32.partialorder %v450, 8.507059e+37
        %v452 = vand.u32 %v437, 2147483648
        %v453 = vor.u32 1.1754944e-38, %v452
        %v454 = vsel %vm451, %v453, %v449
        %v455 = vmul.f32 %v432, %v454
        %v456 = vrcp.pop %v440
        %v457 = vmul.f32 %v440, %v456
        %v458 = vsub.f32 1.0, %v457
        %v459 = vmul.f32 %v456, %v458
        %v460 = vadd.f32 %v456, %v459
        %vm461 = vweird.f32 %v440
        %vm462 = vweird.f32 %v456
        %vm463 = vmor %vm461, %vm462
        %v464 = vsel %vm463, %v456, %v460
        %v465 = vand.u32 2147483647, %v440
        %vm466 = vcmp.eq.f32.partialorder %v465, 8.507059e+37
        %v467 = vand.u32 %v440, 2147483648
        %v468 = vor.u32 1.1754944e-38, %v467
        %v469 = vsel %vm466, %v468, %v464
        %v470 = vmul.f32 %v434, %v469
        %v472 = vsel %vm422, %v455, 0
        %v475 = vsel %vm422, %v470, 0
        %477 = vmatpush.msra.mxu0 0.0
        %478 = vmatpush.msra.mxu0 0.0
        %479 = vmatpush.msra.mxu0 0.0
        %480 = vmatpush.msra.mxu0 0.0
        %481 = vmatpush.msra.mxu0 0.0
        %482 = vmatpush.msra.mxu0 0.0
        %483 = vmatpush.msra.mxu0 0.0
        %484 = vmatpush.msra.mxu0 0.0
        %485 = vmatpush.msra.mxu0 0.0
        %486 = vmatpush.msra.mxu0 0.0
        %487 = vmatpush.msra.mxu0 0.0
        %488 = vmatpush.msra.mxu0 0.0
        %489 = vmatpush.msra.mxu0 0.0
        %490 = vmatpush.msra.mxu0 0.0
        %491 = vmatpush.msra.mxu0 %v368
        %492 = vmatpush.msra.mxu0 %v365
        %493 = vmatmul.f32.gmra.mxu0 %v472
        %v494 = vpop.f32.mrf.mxu0
        %v495 = vadd.f32 0.0, %v494
        %496 = vmatmul.f32.gmra.mxu0 %v475
        %v497 = vpop.f32.mrf.mxu0
        %v498 = vadd.f32 0.0, %v497
        %499 = vdwg.mxu0
        %v501 = vsel %vm388, %v495, 0
        %v504 = vsel %vm388, %v498, 0
        %506 = vmatpush.msra.mxu0 0.0
        %507 = vmatpush.msra.mxu0 0.0
        %508 = vmatpush.msra.mxu0 0.0
        %509 = vmatpush.msra.mxu0 0.0
        %510 = vmatpush.msra.mxu0 0.0
        %511 = vmatpush.msra.mxu0 0.0
        %512 = vmatpush.msra.mxu0 0.0
        %513 = vmatpush.msra.mxu0 0.0
        %514 = vmatpush.msra.mxu0 0.0
        %515 = vmatpush.msra.mxu0 0.0
        %516 = vmatpush.msra.mxu0 0.0
        %517 = vmatpush.msra.mxu0 0.0
        %518 = vmatpush.msra.mxu0 0.0
        %519 = vmatpush.msra.mxu0 0.0
        %520 = vmatpush.msra.mxu0 0.0
        %521 = vmatpush.msra.mxu0 %v370
        %522 = vmatmul.f32.gmra.mxu0 %v501
        %v523 = vpop.f32.mrf.mxu0
        %v524 = vadd.f32 0.0, %v523
        %525 = vmatmul.f32.gmra.mxu0 %v504
        %v526 = vpop.f32.mrf.mxu0
        %v527 = vadd.f32 0.0, %v526
        %528 = vdwg.mxu0
        %v529 = vadd.f32 %v380, %v524
        %v530 = vadd.f32 %v380, %v527
        %531 = vrot.lane.b32.xlu0 %v342, 120
        %v532 = vpop.permute.xlu0 %531
        %533 = vrot.lane.b32.xlu0 %v345, 120
        %v534 = vpop.permute.xlu0 %533
        %535 = vrot.lane.b32.xlu0 %v342, 56
        %v536 = vpop.permute.xlu0 %535
        %537 = vrot.lane.b32.xlu0 %v345, 56
        %v538 = vpop.permute.xlu0 %537
        %v539 = vsel %vm388, %v532, 0
        %v541 = vsel %vm388, %v534, 0
        %v543 = vsel %vm388, %v536, 0
        %v545 = vsel %vm388, %v538, 0
        %547 = vmatpush.xpose.msra.mxu0 0.0
        %548 = vmatpush.xpose.msra.mxu0 0.0
        %549 = vmatpush.xpose.msra.mxu0 0.0
        %550 = vmatpush.xpose.msra.mxu0 0.0
        %551 = vmatpush.xpose.msra.mxu0 0.0
        %552 = vmatpush.xpose.msra.mxu0 0.0
        %553 = vmatpush.xpose.msra.mxu0 0.0
        %554 = vmatpush.xpose.msra.mxu0 0.0
        %555 = vmatpush.xpose.msra.mxu0 0.0
        %556 = vmatpush.xpose.msra.mxu0 0.0
        %557 = vmatpush.xpose.msra.mxu0 0.0
        %558 = vmatpush.xpose.msra.mxu0 0.0
        %559 = vmatpush.xpose.msra.mxu0 0.0
        %560 = vmatpush.xpose.msra.mxu0 0.0
        %561 = vmatpush.xpose.msra.mxu0 %v545
        %562 = vmatpush.xpose.msra.mxu0 %v543
        %563 = vmatmul.f32.gmra.mxu0 %v539
        %v564 = vpop.f32.mrf.mxu0
        %v565 = vadd.f32 0.0, %v564
        %566 = vmatmul.f32.gmra.mxu0 %v541
        %v567 = vpop.f32.mrf.mxu0
        %v568 = vadd.f32 0.0, %v567
        %569 = vdwg.mxu0
        %v570 = vmul.f32 %v565, 0.35355338
        %v571 = vmul.f32 %v568, 0.35355338
        %v572 = vsel %vm422, %v570, -inf
        %573 = vmax.xlane.f32.xlu0 %v572
        %v574 = vpop.xlane.xlu0 %573
        %v575 = vsel %vm422, %v571, -inf
        %576 = vmax.xlane.f32.xlu0 %v575
        %v577 = vpop.xlane.xlu0 %576
        %v578 = vsub.f32 %v570, %v574
        %v579 = vsub.f32 %v571, %v577
        %v580 = vmul.f32 %v578, 1.442695
        %v581 = vpow.pop %v580
        %v582 = vmul.f32 %v579, 1.442695
        %v583 = vpow.pop %v582
        %v584 = vsel %vm422, %v581, 0.0
        %585 = vadd.xlane.f32.xlu0 %v584
        %v586 = vpop.xlane.xlu0 %585
        %v587 = vsel %vm422, %v583, 0.0
        %588 = vadd.xlane.f32.xlu0 %v587
        %v589 = vpop.xlane.xlu0 %588
        %v590 = vrcp.pop %v586
        %v591 = vmul.f32 %v586, %v590
        %v592 = vsub.f32 1.0, %v591
        %v593 = vmul.f32 %v590, %v592
        %v594 = vadd.f32 %v590, %v593
        %vm595 = vweird.f32 %v586
        %vm596 = vweird.f32 %v590
        %vm597 = vmor %vm595, %vm596
        %v598 = vsel %vm597, %v590, %v594
        %v599 = vand.u32 2147483647, %v586
        %vm600 = vcmp.eq.f32.partialorder %v599, 8.507059e+37
        %v601 = vand.u32 %v586, 2147483648
        %v602 = vor.u32 1.1754944e-38, %v601
        %v603 = vsel %vm600, %v602, %v598
        %v604 = vmul.f32 %v581, %v603
        %v605 = vrcp.pop %v589
        %v606 = vmul.f32 %v589, %v605
        %v607 = vsub.f32 1.0, %v606
        %v608 = vmul.f32 %v605, %v607
        %v609 = vadd.f32 %v605, %v608
        %vm610 = vweird.f32 %v589
        %vm611 = vweird.f32 %v605
        %vm612 = vmor %vm610, %vm611
        %v613 = vsel %vm612, %v605, %v609
        %v614 = vand.u32 2147483647, %v589
        %vm615 = vcmp.eq.f32.partialorder %v614, 8.507059e+37
        %v616 = vand.u32 %v589, 2147483648
        %v617 = vor.u32 1.1754944e-38, %v616
        %v618 = vsel %vm615, %v617, %v613
        %v619 = vmul.f32 %v583, %v618
        %622 = vrot.lane.b32.xlu0 %v365, 120
        %v623 = vpop.permute.xlu0 %622
        %624 = vrot.lane.b32.xlu0 %v368, 120
        %v625 = vpop.permute.xlu0 %624
        %v629 = vsel %vm422, %v604, 0
        %v632 = vsel %vm422, %v619, 0
        %634 = vmatpush.msra.mxu0 0.0
        %635 = vmatpush.msra.mxu0 0.0
        %636 = vmatpush.msra.mxu0 0.0
        %637 = vmatpush.msra.mxu0 0.0
        %638 = vmatpush.msra.mxu0 0.0
        %639 = vmatpush.msra.mxu0 0.0
        %640 = vmatpush.msra.mxu0 0.0
        %641 = vmatpush.msra.mxu0 0.0
        %642 = vmatpush.msra.mxu0 0.0
        %643 = vmatpush.msra.mxu0 0.0
        %644 = vmatpush.msra.mxu0 0.0
        %645 = vmatpush.msra.mxu0 0.0
        %646 = vmatpush.msra.mxu0 0.0
        %647 = vmatpush.msra.mxu0 0.0
        %648 = vmatpush.msra.mxu0 %v625
        %649 = vmatpush.msra.mxu0 %v623
        %650 = vmatmul.f32.gmra.mxu0 %v629
        %v651 = vpop.f32.mrf.mxu0
        %v652 = vadd.f32 0.0, %v651
        %653 = vmatmul.f32.gmra.mxu0 %v632
        %v654 = vpop.f32.mrf.mxu0
        %v655 = vadd.f32 0.0, %v654
        %656 = vdwg.mxu0
        %v658 = vsel %vm388, %v652, 0
        %v661 = vsel %vm388, %v655, 0
        %663 = vmatpush.msra.mxu0 0.0
        %664 = vmatpush.msra.mxu0 0.0
        %665 = vmatpush.msra.mxu0 0.0
        %666 = vmatpush.msra.mxu0 0.0
        %667 = vmatpush.msra.mxu0 0.0
        %668 = vmatpush.msra.mxu0 0.0
        %669 = vmatpush.msra.mxu0 0.0
        %670 = vmatpush.msra.mxu0 0.0
        %671 = vmatpush.msra.mxu0 0.0
        %672 = vmatpush.msra.mxu0 0.0
        %673 = vmatpush.msra.mxu0 0.0
        %674 = vmatpush.msra.mxu0 0.0
        %675 = vmatpush.msra.mxu0 0.0
        %676 = vmatpush.msra.mxu0 0.0
        %677 = vmatpush.msra.mxu0 0.0
        %678 = vmatpush.msra.mxu0 %v371
        %679 = vmatmul.f32.gmra.mxu0 %v658
        %v680 = vpop.f32.mrf.mxu0
        %v681 = vadd.f32 0.0, %v680
        %682 = vmatmul.f32.gmra.mxu0 %v661
        %v683 = vpop.f32.mrf.mxu0
        %v684 = vadd.f32 0.0, %v683
        %685 = vdwg.mxu0
        %v686 = vadd.f32 %v529, %v681
        %v687 = vadd.f32 %v530, %v684
        %688 = vrot.lane.b32.xlu0 %v342, 112
        %v689 = vpop.permute.xlu0 %688
        %690 = vrot.lane.b32.xlu0 %v345, 112
        %v691 = vpop.permute.xlu0 %690
        %692 = vrot.lane.b32.xlu0 %v342, 48
        %v693 = vpop.permute.xlu0 %692
        %694 = vrot.lane.b32.xlu0 %v345, 48
        %v695 = vpop.permute.xlu0 %694
        %v696 = vsel %vm388, %v689, 0
        %v698 = vsel %vm388, %v691, 0
        %v700 = vsel %vm388, %v693, 0
        %v702 = vsel %vm388, %v695, 0
        %704 = vmatpush.xpose.msra.mxu0 0.0
        %705 = vmatpush.xpose.msra.mxu0 0.0
        %706 = vmatpush.xpose.msra.mxu0 0.0
        %707 = vmatpush.xpose.msra.mxu0 0.0
        %708 = vmatpush.xpose.msra.mxu0 0.0
        %709 = vmatpush.xpose.msra.mxu0 0.0
        %710 = vmatpush.xpose.msra.mxu0 0.0
        %711 = vmatpush.xpose.msra.mxu0 0.0
        %712 = vmatpush.xpose.msra.mxu0 0.0
        %713 = vmatpush.xpose.msra.mxu0 0.0
        %714 = vmatpush.xpose.msra.mxu0 0.0
        %715 = vmatpush.xpose.msra.mxu0 0.0
        %716 = vmatpush.xpose.msra.mxu0 0.0
        %717 = vmatpush.xpose.msra.mxu0 0.0
        %718 = vmatpush.xpose.msra.mxu0 %v702
        %719 = vmatpush.xpose.msra.mxu0 %v700
        %720 = vmatmul.f32.gmra.mxu0 %v696
        %v721 = vpop.f32.mrf.mxu0
        %v722 = vadd.f32 0.0, %v721
        %723 = vmatmul.f32.gmra.mxu0 %v698
        %v724 = vpop.f32.mrf.mxu0
        %v725 = vadd.f32 0.0, %v724
        %726 = vdwg.mxu0
        %v727 = vmul.f32 %v722, 0.35355338
        %v728 = vmul.f32 %v725, 0.35355338
        %v729 = vsel %vm422, %v727, -inf
        %730 = vmax.xlane.f32.xlu0 %v729
        %v731 = vpop.xlane.xlu0 %730
        %v732 = vsel %vm422, %v728, -inf
        %733 = vmax.xlane.f32.xlu0 %v732
        %v734 = vpop.xlane.xlu0 %733
        %v735 = vsub.f32 %v727, %v731
        %v736 = vsub.f32 %v728, %v734
        %v737 = vmul.f32 %v735, 1.442695
        %v738 = vpow.pop %v737
        %v739 = vmul.f32 %v736, 1.442695
        %v740 = vpow.pop %v739
        %v741 = vsel %vm422, %v738, 0.0
        %742 = vadd.xlane.f32.xlu0 %v741
        %v743 = vpop.xlane.xlu0 %742
        %v744 = vsel %vm422, %v740, 0.0
        %745 = vadd.xlane.f32.xlu0 %v744
        %v746 = vpop.xlane.xlu0 %745
        %v747 = vrcp.pop %v743
        %v748 = vmul.f32 %v743, %v747
        %v749 = vsub.f32 1.0, %v748
        %v750 = vmul.f32 %v747, %v749
        %v751 = vadd.f32 %v747, %v750
        %vm752 = vweird.f32 %v743
        %vm753 = vweird.f32 %v747
        %vm754 = vmor %vm752, %vm753
        %v755 = vsel %vm754, %v747, %v751
        %v756 = vand.u32 2147483647, %v743
        %vm757 = vcmp.eq.f32.partialorder %v756, 8.507059e+37
        %v758 = vand.u32 %v743, 2147483648
        %v759 = vor.u32 1.1754944e-38, %v758
        %v760 = vsel %vm757, %v759, %v755
        %v761 = vmul.f32 %v738, %v760
        %v762 = vrcp.pop %v746
        %v763 = vmul.f32 %v746, %v762
        %v764 = vsub.f32 1.0, %v763
        %v765 = vmul.f32 %v762, %v764
        %v766 = vadd.f32 %v762, %v765
        %vm767 = vweird.f32 %v746
        %vm768 = vweird.f32 %v762
        %vm769 = vmor %vm767, %vm768
        %v770 = vsel %vm769, %v762, %v766
        %v771 = vand.u32 2147483647, %v746
        %vm772 = vcmp.eq.f32.partialorder %v771, 8.507059e+37
        %v773 = vand.u32 %v746, 2147483648
        %v774 = vor.u32 1.1754944e-38, %v773
        %v775 = vsel %vm772, %v774, %v770
        %v776 = vmul.f32 %v740, %v775
        %777 = vrot.lane.b32.xlu0 %v365, 112
        %v778 = vpop.permute.xlu0 %777
        %779 = vrot.lane.b32.xlu0 %v368, 112
        %v780 = vpop.permute.xlu0 %779
        %v784 = vsel %vm422, %v761, 0
        %v787 = vsel %vm422, %v776, 0
        %789 = vmatpush.msra.mxu0 0.0
        %790 = vmatpush.msra.mxu0 0.0
        %791 = vmatpush.msra.mxu0 0.0
        %792 = vmatpush.msra.mxu0 0.0
        %793 = vmatpush.msra.mxu0 0.0
        %794 = vmatpush.msra.mxu0 0.0
        %795 = vmatpush.msra.mxu0 0.0
        %796 = vmatpush.msra.mxu0 0.0
        %797 = vmatpush.msra.mxu0 0.0
        %798 = vmatpush.msra.mxu0 0.0
        %799 = vmatpush.msra.mxu0 0.0
        %800 = vmatpush.msra.mxu0 0.0
        %801 = vmatpush.msra.mxu0 0.0
        %802 = vmatpush.msra.mxu0 0.0
        %803 = vmatpush.msra.mxu0 %v780
        %804 = vmatpush.msra.mxu0 %v778
        %805 = vmatmul.f32.gmra.mxu0 %v784
        %v806 = vpop.f32.mrf.mxu0
        %v807 = vadd.f32 0.0, %v806
        %808 = vmatmul.f32.gmra.mxu0 %v787
        %v809 = vpop.f32.mrf.mxu0
        %v810 = vadd.f32 0.0, %v809
        %811 = vdwg.mxu0
        %v813 = vsel %vm388, %v807, 0
        %v816 = vsel %vm388, %v810, 0
        %818 = vmatpush.msra.mxu0 0.0
        %819 = vmatpush.msra.mxu0 0.0
        %820 = vmatpush.msra.mxu0 0.0
        %821 = vmatpush.msra.mxu0 0.0
        %822 = vmatpush.msra.mxu0 0.0
        %823 = vmatpush.msra.mxu0 0.0
        %824 = vmatpush.msra.mxu0 0.0
        %825 = vmatpush.msra.mxu0 0.0
        %826 = vmatpush.msra.mxu0 0.0
        %827 = vmatpush.msra.mxu0 0.0
        %828 = vmatpush.msra.mxu0 0.0
        %829 = vmatpush.msra.mxu0 0.0
        %830 = vmatpush.msra.mxu0 0.0
        %831 = vmatpush.msra.mxu0 0.0
        %832 = vmatpush.msra.mxu0 0.0
        %833 = vmatpush.msra.mxu0 %v372
        %834 = vmatmul.f32.gmra.mxu0 %v813
        %v835 = vpop.f32.mrf.mxu0
        %v836 = vadd.f32 0.0, %v835
        %837 = vmatmul.f32.gmra.mxu0 %v816
        %v838 = vpop.f32.mrf.mxu0
        %v839 = vadd.f32 0.0, %v838
        %840 = vdwg.mxu0
        %v841 = vadd.f32 %v686, %v836
        %v842 = vadd.f32 %v687, %v839
        %843 = vrot.lane.b32.xlu0 %v342, 104
        %v844 = vpop.permute.xlu0 %843
        %845 = vrot.lane.b32.xlu0 %v345, 104
        %v846 = vpop.permute.xlu0 %845
        %847 = vrot.lane.b32.xlu0 %v342, 40
        %v848 = vpop.permute.xlu0 %847
        %849 = vrot.lane.b32.xlu0 %v345, 40
        %v850 = vpop.permute.xlu0 %849
        %v851 = vsel %vm388, %v844, 0
        %v853 = vsel %vm388, %v846, 0
        %v855 = vsel %vm388, %v848, 0
        %v857 = vsel %vm388, %v850, 0
        %859 = vmatpush.xpose.msra.mxu0 0.0
        %860 = vmatpush.xpose.msra.mxu0 0.0
        %861 = vmatpush.xpose.msra.mxu0 0.0
        %862 = vmatpush.xpose.msra.mxu0 0.0
        %863 = vmatpush.xpose.msra.mxu0 0.0
        %864 = vmatpush.xpose.msra.mxu0 0.0
        %865 = vmatpush.xpose.msra.mxu0 0.0
        %866 = vmatpush.xpose.msra.mxu0 0.0
        %867 = vmatpush.xpose.msra.mxu0 0.0
        %868 = vmatpush.xpose.msra.mxu0 0.0
        %869 = vmatpush.xpose.msra.mxu0 0.0
        %870 = vmatpush.xpose.msra.mxu0 0.0
        %871 = vmatpush.xpose.msra.mxu0 0.0
        %872 = vmatpush.xpose.msra.mxu0 0.0
        %873 = vmatpush.xpose.msra.mxu0 %v857
        %874 = vmatpush.xpose.msra.mxu0 %v855
        %875 = vmatmul.f32.gmra.mxu0 %v851
        %v876 = vpop.f32.mrf.mxu0
        %v877 = vadd.f32 0.0, %v876
        %878 = vmatmul.f32.gmra.mxu0 %v853
        %v879 = vpop.f32.mrf.mxu0
        %v880 = vadd.f32 0.0, %v879
        %881 = vdwg.mxu0
        %v882 = vmul.f32 %v877, 0.35355338
        %v883 = vmul.f32 %v880, 0.35355338
        %v884 = vsel %vm422, %v882, -inf
        %885 = vmax.xlane.f32.xlu0 %v884
        %v886 = vpop.xlane.xlu0 %885
        %v887 = vsel %vm422, %v883, -inf
        %888 = vmax.xlane.f32.xlu0 %v887
        %v889 = vpop.xlane.xlu0 %888
        %v890 = vsub.f32 %v882, %v886
        %v891 = vsub.f32 %v883, %v889
        %v892 = vmul.f32 %v890, 1.442695
        %v893 = vpow.pop %v892
        %v894 = vmul.f32 %v891, 1.442695
        %v895 = vpow.pop %v894
        %v896 = vsel %vm422, %v893, 0.0
        %897 = vadd.xlane.f32.xlu0 %v896
        %v898 = vpop.xlane.xlu0 %897
        %v899 = vsel %vm422, %v895, 0.0
        %900 = vadd.xlane.f32.xlu0 %v899
        %v901 = vpop.xlane.xlu0 %900
        %v902 = vrcp.pop %v898
        %v903 = vmul.f32 %v898, %v902
        %v904 = vsub.f32 1.0, %v903
        %v905 = vmul.f32 %v902, %v904
        %v906 = vadd.f32 %v902, %v905
        %vm907 = vweird.f32 %v898
        %vm908 = vweird.f32 %v902
        %vm909 = vmor %vm907, %vm908
        %v910 = vsel %vm909, %v902, %v906
        %v911 = vand.u32 2147483647, %v898
        %vm912 = vcmp.eq.f32.partialorder %v911, 8.507059e+37
        %v913 = vand.u32 %v898, 2147483648
        %v914 = vor.u32 1.1754944e-38, %v913
        %v915 = vsel %vm912, %v914, %v910
        %v916 = vmul.f32 %v893, %v915
        %v917 = vrcp.pop %v901
        %v918 = vmul.f32 %v901, %v917
        %v919 = vsub.f32 1.0, %v918
        %v920 = vmul.f32 %v917, %v919
        %v921 = vadd.f32 %v917, %v920
        %vm922 = vweird.f32 %v901
        %vm923 = vweird.f32 %v917
        %vm924 = vmor %vm922, %vm923
        %v925 = vsel %vm924, %v917, %v921
        %v926 = vand.u32 2147483647, %v901
        %vm927 = vcmp.eq.f32.partialorder %v926, 8.507059e+37
        %v928 = vand.u32 %v901, 2147483648
        %v929 = vor.u32 1.1754944e-38, %v928
        %v930 = vsel %vm927, %v929, %v925
        %v931 = vmul.f32 %v895, %v930
        %932 = vrot.lane.b32.xlu0 %v365, 104
        %v933 = vpop.permute.xlu0 %932
        %934 = vrot.lane.b32.xlu0 %v368, 104
        %v935 = vpop.permute.xlu0 %934
        %v939 = vsel %vm422, %v916, 0
        %v942 = vsel %vm422, %v931, 0
        %944 = vmatpush.msra.mxu0 0.0
        %945 = vmatpush.msra.mxu0 0.0
        %946 = vmatpush.msra.mxu0 0.0
        %947 = vmatpush.msra.mxu0 0.0
        %948 = vmatpush.msra.mxu0 0.0
        %949 = vmatpush.msra.mxu0 0.0
        %950 = vmatpush.msra.mxu0 0.0
        %951 = vmatpush.msra.mxu0 0.0
        %952 = vmatpush.msra.mxu0 0.0
        %953 = vmatpush.msra.mxu0 0.0
        %954 = vmatpush.msra.mxu0 0.0
        %955 = vmatpush.msra.mxu0 0.0
        %956 = vmatpush.msra.mxu0 0.0
        %957 = vmatpush.msra.mxu0 0.0
        %958 = vmatpush.msra.mxu0 %v935
        %959 = vmatpush.msra.mxu0 %v933
        %960 = vmatmul.f32.gmra.mxu0 %v939
        %v961 = vpop.f32.mrf.mxu0
        %v962 = vadd.f32 0.0, %v961
        %963 = vmatmul.f32.gmra.mxu0 %v942
        %v964 = vpop.f32.mrf.mxu0
        %v965 = vadd.f32 0.0, %v964
        %966 = vdwg.mxu0
        %v968 = vsel %vm388, %v962, 0
        %v971 = vsel %vm388, %v965, 0
        %973 = vmatpush.msra.mxu0 0.0
        %974 = vmatpush.msra.mxu0 0.0
        %975 = vmatpush.msra.mxu0 0.0
        %976 = vmatpush.msra.mxu0 0.0
        %977 = vmatpush.msra.mxu0 0.0
        %978 = vmatpush.msra.mxu0 0.0
        %979 = vmatpush.msra.mxu0 0.0
        %980 = vmatpush.msra.mxu0 0.0
        %981 = vmatpush.msra.mxu0 0.0
        %982 = vmatpush.msra.mxu0 0.0
        %983 = vmatpush.msra.mxu0 0.0
        %984 = vmatpush.msra.mxu0 0.0
        %985 = vmatpush.msra.mxu0 0.0
        %986 = vmatpush.msra.mxu0 0.0
        %987 = vmatpush.msra.mxu0 0.0
        %988 = vmatpush.msra.mxu0 %v373
        %989 = vmatmul.f32.gmra.mxu0 %v968
        %v990 = vpop.f32.mrf.mxu0
        %v991 = vadd.f32 0.0, %v990
        %992 = vmatmul.f32.gmra.mxu0 %v971
        %v993 = vpop.f32.mrf.mxu0
        %v994 = vadd.f32 0.0, %v993
        %995 = vdwg.mxu0
        %v996 = vadd.f32 %v841, %v991
        %v997 = vadd.f32 %v842, %v994
        %998 = vrot.lane.b32.xlu0 %v342, 96
        %v999 = vpop.permute.xlu0 %998
        %1000 = vrot.lane.b32.xlu0 %v345, 96
        %v1001 = vpop.permute.xlu0 %1000
        %1002 = vrot.lane.b32.xlu0 %v342, 32
        %v1003 = vpop.permute.xlu0 %1002
        %1004 = vrot.lane.b32.xlu0 %v345, 32
        %v1005 = vpop.permute.xlu0 %1004
        %v1006 = vsel %vm388, %v999, 0
        %v1008 = vsel %vm388, %v1001, 0
        %v1010 = vsel %vm388, %v1003, 0
        %v1012 = vsel %vm388, %v1005, 0
        %1014 = vmatpush.xpose.msra.mxu0 0.0
        %1015 = vmatpush.xpose.msra.mxu0 0.0
        %1016 = vmatpush.xpose.msra.mxu0 0.0
        %1017 = vmatpush.xpose.msra.mxu0 0.0
        %1018 = vmatpush.xpose.msra.mxu0 0.0
        %1019 = vmatpush.xpose.msra.mxu0 0.0
        %1020 = vmatpush.xpose.msra.mxu0 0.0
        %1021 = vmatpush.xpose.msra.mxu0 0.0
        %1022 = vmatpush.xpose.msra.mxu0 0.0
        %1023 = vmatpush.xpose.msra.mxu0 0.0
        %1024 = vmatpush.xpose.msra.mxu0 0.0
        %1025 = vmatpush.xpose.msra.mxu0 0.0
        %1026 = vmatpush.xpose.msra.mxu0 0.0
        %1027 = vmatpush.xpose.msra.mxu0 0.0
        %1028 = vmatpush.xpose.msra.mxu0 %v1012
        %1029 = vmatpush.xpose.msra.mxu0 %v1010
        %1030 = vmatmul.f32.gmra.mxu0 %v1006
        %v1031 = vpop.f32.mrf.mxu0
        %v1032 = vadd.f32 0.0, %v1031
        %1033 = vmatmul.f32.gmra.mxu0 %v1008
        %v1034 = vpop.f32.mrf.mxu0
        %v1035 = vadd.f32 0.0, %v1034
        %1036 = vdwg.mxu0
        %v1037 = vmul.f32 %v1032, 0.35355338
        %v1038 = vmul.f32 %v1035, 0.35355338
        %v1039 = vsel %vm422, %v1037, -inf
        %1040 = vmax.xlane.f32.xlu0 %v1039
        %v1041 = vpop.xlane.xlu0 %1040
        %v1042 = vsel %vm422, %v1038, -inf
        %1043 = vmax.xlane.f32.xlu0 %v1042
        %v1044 = vpop.xlane.xlu0 %1043
        %v1045 = vsub.f32 %v1037, %v1041
        %v1046 = vsub.f32 %v1038, %v1044
        %v1047 = vmul.f32 %v1045, 1.442695
        %v1048 = vpow.pop %v1047
        %v1049 = vmul.f32 %v1046, 1.442695
        %v1050 = vpow.pop %v1049
        %v1051 = vsel %vm422, %v1048, 0.0
        %1052 = vadd.xlane.f32.xlu0 %v1051
        %v1053 = vpop.xlane.xlu0 %1052
        %v1054 = vsel %vm422, %v1050, 0.0
        %1055 = vadd.xlane.f32.xlu0 %v1054
        %v1056 = vpop.xlane.xlu0 %1055
        %v1057 = vrcp.pop %v1053
        %v1058 = vmul.f32 %v1053, %v1057
        %v1059 = vsub.f32 1.0, %v1058
        %v1060 = vmul.f32 %v1057, %v1059
        %v1061 = vadd.f32 %v1057, %v1060
        %vm1062 = vweird.f32 %v1053
        %vm1063 = vweird.f32 %v1057
        %vm1064 = vmor %vm1062, %vm1063
        %v1065 = vsel %vm1064, %v1057, %v1061
        %v1066 = vand.u32 2147483647, %v1053
        %vm1067 = vcmp.eq.f32.partialorder %v1066, 8.507059e+37
        %v1068 = vand.u32 %v1053, 2147483648
        %v1069 = vor.u32 1.1754944e-38, %v1068
        %v1070 = vsel %vm1067, %v1069, %v1065
        %v1071 = vmul.f32 %v1048, %v1070
        %v1072 = vrcp.pop %v1056
        %v1073 = vmul.f32 %v1056, %v1072
        %v1074 = vsub.f32 1.0, %v1073
        %v1075 = vmul.f32 %v1072, %v1074
        %v1076 = vadd.f32 %v1072, %v1075
        %vm1077 = vweird.f32 %v1056
        %vm1078 = vweird.f32 %v1072
        %vm1079 = vmor %vm1077, %vm1078
        %v1080 = vsel %vm1079, %v1072, %v1076
        %v1081 = vand.u32 2147483647, %v1056
        %vm1082 = vcmp.eq.f32.partialorder %v1081, 8.507059e+37
        %v1083 = vand.u32 %v1056, 2147483648
        %v1084 = vor.u32 1.1754944e-38, %v1083
        %v1085 = vsel %vm1082, %v1084, %v1080
        %v1086 = vmul.f32 %v1050, %v1085
        %1087 = vrot.lane.b32.xlu0 %v365, 96
        %v1088 = vpop.permute.xlu0 %1087
        %1089 = vrot.lane.b32.xlu0 %v368, 96
        %v1090 = vpop.permute.xlu0 %1089
        %v1094 = vsel %vm422, %v1071, 0
        %v1097 = vsel %vm422, %v1086, 0
        %1099 = vmatpush.msra.mxu0 0.0
        %1100 = vmatpush.msra.mxu0 0.0
        %1101 = vmatpush.msra.mxu0 0.0
        %1102 = vmatpush.msra.mxu0 0.0
        %1103 = vmatpush.msra.mxu0 0.0
        %1104 = vmatpush.msra.mxu0 0.0
        %1105 = vmatpush.msra.mxu0 0.0
        %1106 = vmatpush.msra.mxu0 0.0
        %1107 = vmatpush.msra.mxu0 0.0
        %1108 = vmatpush.msra.mxu0 0.0
        %1109 = vmatpush.msra.mxu0 0.0
        %1110 = vmatpush.msra.mxu0 0.0
        %1111 = vmatpush.msra.mxu0 0.0
        %1112 = vmatpush.msra.mxu0 0.0
        %1113 = vmatpush.msra.mxu0 %v1090
        %1114 = vmatpush.msra.mxu0 %v1088
        %1115 = vmatmul.f32.gmra.mxu0 %v1094
        %v1116 = vpop.f32.mrf.mxu0
        %v1117 = vadd.f32 0.0, %v1116
        %1118 = vmatmul.f32.gmra.mxu0 %v1097
        %v1119 = vpop.f32.mrf.mxu0
        %v1120 = vadd.f32 0.0, %v1119
        %1121 = vdwg.mxu0
        %v1123 = vsel %vm388, %v1117, 0
        %v1126 = vsel %vm388, %v1120, 0
        %1128 = vmatpush.msra.mxu0 0.0
        %1129 = vmatpush.msra.mxu0 0.0
        %1130 = vmatpush.msra.mxu0 0.0
        %1131 = vmatpush.msra.mxu0 0.0
        %1132 = vmatpush.msra.mxu0 0.0
        %1133 = vmatpush.msra.mxu0 0.0
        %1134 = vmatpush.msra.mxu0 0.0
        %1135 = vmatpush.msra.mxu0 0.0
        %1136 = vmatpush.msra.mxu0 0.0
        %1137 = vmatpush.msra.mxu0 0.0
        %1138 = vmatpush.msra.mxu0 0.0
        %1139 = vmatpush.msra.mxu0 0.0
        %1140 = vmatpush.msra.mxu0 0.0
        %1141 = vmatpush.msra.mxu0 0.0
        %1142 = vmatpush.msra.mxu0 0.0
        %1143 = vmatpush.msra.mxu0 %v374
        %1144 = vmatmul.f32.gmra.mxu0 %v1123
        %v1145 = vpop.f32.mrf.mxu0
        %v1146 = vadd.f32 0.0, %v1145
        %1147 = vmatmul.f32.gmra.mxu0 %v1126
        %v1148 = vpop.f32.mrf.mxu0
        %v1149 = vadd.f32 0.0, %v1148
        %1150 = vdwg.mxu0
        %v1151 = vadd.f32 %v996, %v1146
        %v1152 = vadd.f32 %v997, %v1149
        %1153 = vrot.lane.b32.xlu0 %v342, 88
        %v1154 = vpop.permute.xlu0 %1153
        %1155 = vrot.lane.b32.xlu0 %v345, 88
        %v1156 = vpop.permute.xlu0 %1155
        %1157 = vrot.lane.b32.xlu0 %v342, 24
        %v1158 = vpop.permute.xlu0 %1157
        %1159 = vrot.lane.b32.xlu0 %v345, 24
        %v1160 = vpop.permute.xlu0 %1159
        %v1161 = vsel %vm388, %v1154, 0
        %v1163 = vsel %vm388, %v1156, 0
        %v1165 = vsel %vm388, %v1158, 0
        %v1167 = vsel %vm388, %v1160, 0
        %1169 = vmatpush.xpose.msra.mxu0 0.0
        %1170 = vmatpush.xpose.msra.mxu0 0.0
        %1171 = vmatpush.xpose.msra.mxu0 0.0
        %1172 = vmatpush.xpose.msra.mxu0 0.0
        %1173 = vmatpush.xpose.msra.mxu0 0.0
        %1174 = vmatpush.xpose.msra.mxu0 0.0
        %1175 = vmatpush.xpose.msra.mxu0 0.0
        %1176 = vmatpush.xpose.msra.mxu0 0.0
        %1177 = vmatpush.xpose.msra.mxu0 0.0
        %1178 = vmatpush.xpose.msra.mxu0 0.0
        %1179 = vmatpush.xpose.msra.mxu0 0.0
        %1180 = vmatpush.xpose.msra.mxu0 0.0
        %1181 = vmatpush.xpose.msra.mxu0 0.0
        %1182 = vmatpush.xpose.msra.mxu0 0.0
        %1183 = vmatpush.xpose.msra.mxu0 %v1167
        %1184 = vmatpush.xpose.msra.mxu0 %v1165
        %1185 = vmatmul.f32.gmra.mxu0 %v1161
        %v1186 = vpop.f32.mrf.mxu0
        %v1187 = vadd.f32 0.0, %v1186
        %1188 = vmatmul.f32.gmra.mxu0 %v1163
        %v1189 = vpop.f32.mrf.mxu0
        %v1190 = vadd.f32 0.0, %v1189
        %1191 = vdwg.mxu0
        %v1192 = vmul.f32 %v1187, 0.35355338
        %v1193 = vmul.f32 %v1190, 0.35355338
        %v1194 = vsel %vm422, %v1192, -inf
        %1195 = vmax.xlane.f32.xlu0 %v1194
        %v1196 = vpop.xlane.xlu0 %1195
        %v1197 = vsel %vm422, %v1193, -inf
        %1198 = vmax.xlane.f32.xlu0 %v1197
        %v1199 = vpop.xlane.xlu0 %1198
        %v1200 = vsub.f32 %v1192, %v1196
        %v1201 = vsub.f32 %v1193, %v1199
        %v1202 = vmul.f32 %v1200, 1.442695
        %v1203 = vpow.pop %v1202
        %v1204 = vmul.f32 %v1201, 1.442695
        %v1205 = vpow.pop %v1204
        %v1206 = vsel %vm422, %v1203, 0.0
        %1207 = vadd.xlane.f32.xlu0 %v1206
        %v1208 = vpop.xlane.xlu0 %1207
        %v1209 = vsel %vm422, %v1205, 0.0
        %1210 = vadd.xlane.f32.xlu0 %v1209
        %v1211 = vpop.xlane.xlu0 %1210
        %v1212 = vrcp.pop %v1208
        %v1213 = vmul.f32 %v1208, %v1212
        %v1214 = vsub.f32 1.0, %v1213
        %v1215 = vmul.f32 %v1212, %v1214
        %v1216 = vadd.f32 %v1212, %v1215
        %vm1217 = vweird.f32 %v1208
        %vm1218 = vweird.f32 %v1212
        %vm1219 = vmor %vm1217, %vm1218
        %v1220 = vsel %vm1219, %v1212, %v1216
        %v1221 = vand.u32 2147483647, %v1208
        %vm1222 = vcmp.eq.f32.partialorder %v1221, 8.507059e+37
        %v1223 = vand.u32 %v1208, 2147483648
        %v1224 = vor.u32 1.1754944e-38, %v1223
        %v1225 = vsel %vm1222, %v1224, %v1220
        %v1226 = vmul.f32 %v1203, %v1225
        %v1227 = vrcp.pop %v1211
        %v1228 = vmul.f32 %v1211, %v1227
        %v1229 = vsub.f32 1.0, %v1228
        %v1230 = vmul.f32 %v1227, %v1229
        %v1231 = vadd.f32 %v1227, %v1230
        %vm1232 = vweird.f32 %v1211
        %vm1233 = vweird.f32 %v1227
        %vm1234 = vmor %vm1232, %vm1233
        %v1235 = vsel %vm1234, %v1227, %v1231
        %v1236 = vand.u32 2147483647, %v1211
        %vm1237 = vcmp.eq.f32.partialorder %v1236, 8.507059e+37
        %v1238 = vand.u32 %v1211, 2147483648
        %v1239 = vor.u32 1.1754944e-38, %v1238
        %v1240 = vsel %vm1237, %v1239, %v1235
        %v1241 = vmul.f32 %v1205, %v1240
        %1242 = vrot.lane.b32.xlu0 %v365, 88
        %v1243 = vpop.permute.xlu0 %1242
        %1244 = vrot.lane.b32.xlu0 %v368, 88
        %v1245 = vpop.permute.xlu0 %1244
        %v1249 = vsel %vm422, %v1226, 0
        %v1252 = vsel %vm422, %v1241, 0
        %1254 = vmatpush.msra.mxu0 0.0
        %1255 = vmatpush.msra.mxu0 0.0
        %1256 = vmatpush.msra.mxu0 0.0
        %1257 = vmatpush.msra.mxu0 0.0
        %1258 = vmatpush.msra.mxu0 0.0
        %1259 = vmatpush.msra.mxu0 0.0
        %1260 = vmatpush.msra.mxu0 0.0
        %1261 = vmatpush.msra.mxu0 0.0
        %1262 = vmatpush.msra.mxu0 0.0
        %1263 = vmatpush.msra.mxu0 0.0
        %1264 = vmatpush.msra.mxu0 0.0
        %1265 = vmatpush.msra.mxu0 0.0
        %1266 = vmatpush.msra.mxu0 0.0
        %1267 = vmatpush.msra.mxu0 0.0
        %1268 = vmatpush.msra.mxu0 %v1245
        %1269 = vmatpush.msra.mxu0 %v1243
        %1270 = vmatmul.f32.gmra.mxu0 %v1249
        %v1271 = vpop.f32.mrf.mxu0
        %v1272 = vadd.f32 0.0, %v1271
        %1273 = vmatmul.f32.gmra.mxu0 %v1252
        %v1274 = vpop.f32.mrf.mxu0
        %v1275 = vadd.f32 0.0, %v1274
        %1276 = vdwg.mxu0
        %v1278 = vsel %vm388, %v1272, 0
        %v1281 = vsel %vm388, %v1275, 0
        %1283 = vmatpush.msra.mxu0 0.0
        %1284 = vmatpush.msra.mxu0 0.0
        %1285 = vmatpush.msra.mxu0 0.0
        %1286 = vmatpush.msra.mxu0 0.0
        %1287 = vmatpush.msra.mxu0 0.0
        %1288 = vmatpush.msra.mxu0 0.0
        %1289 = vmatpush.msra.mxu0 0.0
        %1290 = vmatpush.msra.mxu0 0.0
        %1291 = vmatpush.msra.mxu0 0.0
        %1292 = vmatpush.msra.mxu0 0.0
        %1293 = vmatpush.msra.mxu0 0.0
        %1294 = vmatpush.msra.mxu0 0.0
        %1295 = vmatpush.msra.mxu0 0.0
        %1296 = vmatpush.msra.mxu0 0.0
        %1297 = vmatpush.msra.mxu0 0.0
        %1298 = vmatpush.msra.mxu0 %v375
        %1299 = vmatmul.f32.gmra.mxu0 %v1278
        %v1300 = vpop.f32.mrf.mxu0
        %v1301 = vadd.f32 0.0, %v1300
        %1302 = vmatmul.f32.gmra.mxu0 %v1281
        %v1303 = vpop.f32.mrf.mxu0
        %v1304 = vadd.f32 0.0, %v1303
        %1305 = vdwg.mxu0
        %v1306 = vadd.f32 %v1151, %v1301
        %v1307 = vadd.f32 %v1152, %v1304
        %1308 = vrot.lane.b32.xlu0 %v342, 80
        %v1309 = vpop.permute.xlu0 %1308
        %1310 = vrot.lane.b32.xlu0 %v345, 80
        %v1311 = vpop.permute.xlu0 %1310
        %1312 = vrot.lane.b32.xlu0 %v342, 16
        %v1313 = vpop.permute.xlu0 %1312
        %1314 = vrot.lane.b32.xlu0 %v345, 16
        %v1315 = vpop.permute.xlu0 %1314
        %v1316 = vsel %vm388, %v1309, 0
        %v1318 = vsel %vm388, %v1311, 0
        %v1320 = vsel %vm388, %v1313, 0
        %v1322 = vsel %vm388, %v1315, 0
        %1324 = vmatpush.xpose.msra.mxu0 0.0
        %1325 = vmatpush.xpose.msra.mxu0 0.0
        %1326 = vmatpush.xpose.msra.mxu0 0.0
        %1327 = vmatpush.xpose.msra.mxu0 0.0
        %1328 = vmatpush.xpose.msra.mxu0 0.0
        %1329 = vmatpush.xpose.msra.mxu0 0.0
        %1330 = vmatpush.xpose.msra.mxu0 0.0
        %1331 = vmatpush.xpose.msra.mxu0 0.0
        %1332 = vmatpush.xpose.msra.mxu0 0.0
        %1333 = vmatpush.xpose.msra.mxu0 0.0
        %1334 = vmatpush.xpose.msra.mxu0 0.0
        %1335 = vmatpush.xpose.msra.mxu0 0.0
        %1336 = vmatpush.xpose.msra.mxu0 0.0
        %1337 = vmatpush.xpose.msra.mxu0 0.0
        %1338 = vmatpush.xpose.msra.mxu0 %v1322
        %1339 = vmatpush.xpose.msra.mxu0 %v1320
        %1340 = vmatmul.f32.gmra.mxu0 %v1316
        %v1341 = vpop.f32.mrf.mxu0
        %v1342 = vadd.f32 0.0, %v1341
        %1343 = vmatmul.f32.gmra.mxu0 %v1318
        %v1344 = vpop.f32.mrf.mxu0
        %v1345 = vadd.f32 0.0, %v1344
        %1346 = vdwg.mxu0
        %v1347 = vmul.f32 %v1342, 0.35355338
        %v1348 = vmul.f32 %v1345, 0.35355338
        %v1349 = vsel %vm422, %v1347, -inf
        %1350 = vmax.xlane.f32.xlu0 %v1349
        %v1351 = vpop.xlane.xlu0 %1350
        %v1352 = vsel %vm422, %v1348, -inf
        %1353 = vmax.xlane.f32.xlu0 %v1352
        %v1354 = vpop.xlane.xlu0 %1353
        %v1355 = vsub.f32 %v1347, %v1351
        %v1356 = vsub.f32 %v1348, %v1354
        %v1357 = vmul.f32 %v1355, 1.442695
        %v1358 = vpow.pop %v1357
        %v1359 = vmul.f32 %v1356, 1.442695
        %v1360 = vpow.pop %v1359
        %v1361 = vsel %vm422, %v1358, 0.0
        %1362 = vadd.xlane.f32.xlu0 %v1361
        %v1363 = vpop.xlane.xlu0 %1362
        %v1364 = vsel %vm422, %v1360, 0.0
        %1365 = vadd.xlane.f32.xlu0 %v1364
        %v1366 = vpop.xlane.xlu0 %1365
        %v1367 = vrcp.pop %v1363
        %v1368 = vmul.f32 %v1363, %v1367
        %v1369 = vsub.f32 1.0, %v1368
        %v1370 = vmul.f32 %v1367, %v1369
        %v1371 = vadd.f32 %v1367, %v1370
        %vm1372 = vweird.f32 %v1363
        %vm1373 = vweird.f32 %v1367
        %vm1374 = vmor %vm1372, %vm1373
        %v1375 = vsel %vm1374, %v1367, %v1371
        %v1376 = vand.u32 2147483647, %v1363
        %vm1377 = vcmp.eq.f32.partialorder %v1376, 8.507059e+37
        %v1378 = vand.u32 %v1363, 2147483648
        %v1379 = vor.u32 1.1754944e-38, %v1378
        %v1380 = vsel %vm1377, %v1379, %v1375
        %v1381 = vmul.f32 %v1358, %v1380
        %v1382 = vrcp.pop %v1366
        %v1383 = vmul.f32 %v1366, %v1382
        %v1384 = vsub.f32 1.0, %v1383
        %v1385 = vmul.f32 %v1382, %v1384
        %v1386 = vadd.f32 %v1382, %v1385
        %vm1387 = vweird.f32 %v1366
        %vm1388 = vweird.f32 %v1382
        %vm1389 = vmor %vm1387, %vm1388
        %v1390 = vsel %vm1389, %v1382, %v1386
        %v1391 = vand.u32 2147483647, %v1366
        %vm1392 = vcmp.eq.f32.partialorder %v1391, 8.507059e+37
        %v1393 = vand.u32 %v1366, 2147483648
        %v1394 = vor.u32 1.1754944e-38, %v1393
        %v1395 = vsel %vm1392, %v1394, %v1390
        %v1396 = vmul.f32 %v1360, %v1395
        %1397 = vrot.lane.b32.xlu0 %v365, 80
        %v1398 = vpop.permute.xlu0 %1397
        %1399 = vrot.lane.b32.xlu0 %v368, 80
        %v1400 = vpop.permute.xlu0 %1399
        %v1404 = vsel %vm422, %v1381, 0
        %v1407 = vsel %vm422, %v1396, 0
        %1409 = vmatpush.msra.mxu0 0.0
        %1410 = vmatpush.msra.mxu0 0.0
        %1411 = vmatpush.msra.mxu0 0.0
        %1412 = vmatpush.msra.mxu0 0.0
        %1413 = vmatpush.msra.mxu0 0.0
        %1414 = vmatpush.msra.mxu0 0.0
        %1415 = vmatpush.msra.mxu0 0.0
        %1416 = vmatpush.msra.mxu0 0.0
        %1417 = vmatpush.msra.mxu0 0.0
        %1418 = vmatpush.msra.mxu0 0.0
        %1419 = vmatpush.msra.mxu0 0.0
        %1420 = vmatpush.msra.mxu0 0.0
        %1421 = vmatpush.msra.mxu0 0.0
        %1422 = vmatpush.msra.mxu0 0.0
        %1423 = vmatpush.msra.mxu0 %v1400
        %1424 = vmatpush.msra.mxu0 %v1398
        %1425 = vmatmul.f32.gmra.mxu0 %v1404
        %v1426 = vpop.f32.mrf.mxu0
        %v1427 = vadd.f32 0.0, %v1426
        %1428 = vmatmul.f32.gmra.mxu0 %v1407
        %v1429 = vpop.f32.mrf.mxu0
        %v1430 = vadd.f32 0.0, %v1429
        %1431 = vdwg.mxu0
        %v1433 = vsel %vm388, %v1427, 0
        %v1436 = vsel %vm388, %v1430, 0
        %1438 = vmatpush.msra.mxu0 0.0
        %1439 = vmatpush.msra.mxu0 0.0
        %1440 = vmatpush.msra.mxu0 0.0
        %1441 = vmatpush.msra.mxu0 0.0
        %1442 = vmatpush.msra.mxu0 0.0
        %1443 = vmatpush.msra.mxu0 0.0
        %1444 = vmatpush.msra.mxu0 0.0
        %1445 = vmatpush.msra.mxu0 0.0
        %1446 = vmatpush.msra.mxu0 0.0
        %1447 = vmatpush.msra.mxu0 0.0
        %1448 = vmatpush.msra.mxu0 0.0
        %1449 = vmatpush.msra.mxu0 0.0
        %1450 = vmatpush.msra.mxu0 0.0
        %1451 = vmatpush.msra.mxu0 0.0
        %1452 = vmatpush.msra.mxu0 0.0
        %1453 = vmatpush.msra.mxu0 %v376
        %1454 = vmatmul.f32.gmra.mxu0 %v1433
        %v1455 = vpop.f32.mrf.mxu0
        %v1456 = vadd.f32 0.0, %v1455
        %1457 = vmatmul.f32.gmra.mxu0 %v1436
        %v1458 = vpop.f32.mrf.mxu0
        %v1459 = vadd.f32 0.0, %v1458
        %1460 = vdwg.mxu0
        %v1461 = vadd.f32 %v1306, %v1456
        %v1462 = vadd.f32 %v1307, %v1459
        %1463 = vrot.lane.b32.xlu0 %v342, 72
        %v1464 = vpop.permute.xlu0 %1463
        %1465 = vrot.lane.b32.xlu0 %v345, 72
        %v1466 = vpop.permute.xlu0 %1465
        %1467 = vrot.lane.b32.xlu0 %v342, 8
        %v1468 = vpop.permute.xlu0 %1467
        %1469 = vrot.lane.b32.xlu0 %v345, 8
        %v1470 = vpop.permute.xlu0 %1469
        %v1471 = vsel %vm388, %v1464, 0
        %v1473 = vsel %vm388, %v1466, 0
        %v1475 = vsel %vm388, %v1468, 0
        %v1477 = vsel %vm388, %v1470, 0
        %1479 = vmatpush.xpose.msra.mxu0 0.0
        %1480 = vmatpush.xpose.msra.mxu0 0.0
        %1481 = vmatpush.xpose.msra.mxu0 0.0
        %1482 = vmatpush.xpose.msra.mxu0 0.0
        %1483 = vmatpush.xpose.msra.mxu0 0.0
        %1484 = vmatpush.xpose.msra.mxu0 0.0
        %1485 = vmatpush.xpose.msra.mxu0 0.0
        %1486 = vmatpush.xpose.msra.mxu0 0.0
        %1487 = vmatpush.xpose.msra.mxu0 0.0
        %1488 = vmatpush.xpose.msra.mxu0 0.0
        %1489 = vmatpush.xpose.msra.mxu0 0.0
        %1490 = vmatpush.xpose.msra.mxu0 0.0
        %1491 = vmatpush.xpose.msra.mxu0 0.0
        %1492 = vmatpush.xpose.msra.mxu0 0.0
        %1493 = vmatpush.xpose.msra.mxu0 %v1477
        %1494 = vmatpush.xpose.msra.mxu0 %v1475
        %1495 = vmatmul.f32.gmra.mxu0 %v1471
        %v1496 = vpop.f32.mrf.mxu0
        %v1497 = vadd.f32 0.0, %v1496
        %1498 = vmatmul.f32.gmra.mxu0 %v1473
        %v1499 = vpop.f32.mrf.mxu0
        %v1500 = vadd.f32 0.0, %v1499
        %1501 = vdwg.mxu0
        %v1502 = vmul.f32 %v1497, 0.35355338
        %v1503 = vmul.f32 %v1500, 0.35355338
        %v1504 = vsel %vm422, %v1502, -inf
        %1505 = vmax.xlane.f32.xlu0 %v1504
        %v1506 = vpop.xlane.xlu0 %1505
        %v1507 = vsel %vm422, %v1503, -inf
        %1508 = vmax.xlane.f32.xlu0 %v1507
        %v1509 = vpop.xlane.xlu0 %1508
        %v1510 = vsub.f32 %v1502, %v1506
        %v1511 = vsub.f32 %v1503, %v1509
        %v1512 = vmul.f32 %v1510, 1.442695
        %v1513 = vpow.pop %v1512
        %v1514 = vmul.f32 %v1511, 1.442695
        %v1515 = vpow.pop %v1514
        %v1516 = vsel %vm422, %v1513, 0.0
        %1517 = vadd.xlane.f32.xlu0 %v1516
        %v1518 = vpop.xlane.xlu0 %1517
        %v1519 = vsel %vm422, %v1515, 0.0
        %1520 = vadd.xlane.f32.xlu0 %v1519
        %v1521 = vpop.xlane.xlu0 %1520
        %v1522 = vrcp.pop %v1518
        %v1523 = vmul.f32 %v1518, %v1522
        %v1524 = vsub.f32 1.0, %v1523
        %v1525 = vmul.f32 %v1522, %v1524
        %v1526 = vadd.f32 %v1522, %v1525
        %vm1527 = vweird.f32 %v1518
        %vm1528 = vweird.f32 %v1522
        %vm1529 = vmor %vm1527, %vm1528
        %v1530 = vsel %vm1529, %v1522, %v1526
        %v1531 = vand.u32 2147483647, %v1518
        %vm1532 = vcmp.eq.f32.partialorder %v1531, 8.507059e+37
        %v1533 = vand.u32 %v1518, 2147483648
        %v1534 = vor.u32 1.1754944e-38, %v1533
        %v1535 = vsel %vm1532, %v1534, %v1530
        %v1536 = vmul.f32 %v1513, %v1535
        %v1537 = vrcp.pop %v1521
        %v1538 = vmul.f32 %v1521, %v1537
        %v1539 = vsub.f32 1.0, %v1538
        %v1540 = vmul.f32 %v1537, %v1539
        %v1541 = vadd.f32 %v1537, %v1540
        %vm1542 = vweird.f32 %v1521
        %vm1543 = vweird.f32 %v1537
        %vm1544 = vmor %vm1542, %vm1543
        %v1545 = vsel %vm1544, %v1537, %v1541
        %v1546 = vand.u32 2147483647, %v1521
        %vm1547 = vcmp.eq.f32.partialorder %v1546, 8.507059e+37
        %v1548 = vand.u32 %v1521, 2147483648
        %v1549 = vor.u32 1.1754944e-38, %v1548
        %v1550 = vsel %vm1547, %v1549, %v1545
        %v1551 = vmul.f32 %v1515, %v1550
        %1552 = vrot.lane.b32.xlu0 %v365, 72
        %v1553 = vpop.permute.xlu0 %1552
        %1554 = vrot.lane.b32.xlu0 %v368, 72
        %v1555 = vpop.permute.xlu0 %1554
        %v1559 = vsel %vm422, %v1536, 0
        %v1562 = vsel %vm422, %v1551, 0
        %1564 = vmatpush.msra.mxu0 0.0
        %1565 = vmatpush.msra.mxu0 0.0
        %1566 = vmatpush.msra.mxu0 0.0
        %1567 = vmatpush.msra.mxu0 0.0
        %1568 = vmatpush.msra.mxu0 0.0
        %1569 = vmatpush.msra.mxu0 0.0
        %1570 = vmatpush.msra.mxu0 0.0
        %1571 = vmatpush.msra.mxu0 0.0
        %1572 = vmatpush.msra.mxu0 0.0
        %1573 = vmatpush.msra.mxu0 0.0
        %1574 = vmatpush.msra.mxu0 0.0
        %1575 = vmatpush.msra.mxu0 0.0
        %1576 = vmatpush.msra.mxu0 0.0
        %1577 = vmatpush.msra.mxu0 0.0
        %1578 = vmatpush.msra.mxu0 %v1555
        %1579 = vmatpush.msra.mxu0 %v1553
        %1580 = vmatmul.f32.gmra.mxu0 %v1559
        %v1581 = vpop.f32.mrf.mxu0
        %v1582 = vadd.f32 0.0, %v1581
        %1583 = vmatmul.f32.gmra.mxu0 %v1562
        %v1584 = vpop.f32.mrf.mxu0
        %v1585 = vadd.f32 0.0, %v1584
        %1586 = vdwg.mxu0
        %v1588 = vsel %vm388, %v1582, 0
        %v1591 = vsel %vm388, %v1585, 0
        %1593 = vmatpush.msra.mxu0 0.0
        %1594 = vmatpush.msra.mxu0 0.0
        %1595 = vmatpush.msra.mxu0 0.0
        %1596 = vmatpush.msra.mxu0 0.0
        %1597 = vmatpush.msra.mxu0 0.0
        %1598 = vmatpush.msra.mxu0 0.0
        %1599 = vmatpush.msra.mxu0 0.0
        %1600 = vmatpush.msra.mxu0 0.0
        %1601 = vmatpush.msra.mxu0 0.0
        %1602 = vmatpush.msra.mxu0 0.0
        %1603 = vmatpush.msra.mxu0 0.0
        %1604 = vmatpush.msra.mxu0 0.0
        %1605 = vmatpush.msra.mxu0 0.0
        %1606 = vmatpush.msra.mxu0 0.0
        %1607 = vmatpush.msra.mxu0 0.0
        %1608 = vmatpush.msra.mxu0 %v377
        %1609 = vmatmul.f32.gmra.mxu0 %v1588
        %v1610 = vpop.f32.mrf.mxu0
        %v1611 = vadd.f32 0.0, %v1610
        %1612 = vmatmul.f32.gmra.mxu0 %v1591
        %v1613 = vpop.f32.mrf.mxu0
        %v1614 = vadd.f32 0.0, %v1613
        %1615 = vdwg.mxu0
        %v1616 = vadd.f32 %v1461, %v1611
        %v1617 = vadd.f32 %v1462, %v1614
        %1618 = vst.msk [vmem:[%s292] sm:$0xff] %vm317, %v1616
        %1619 = vst.msk [vmem:[%s292 + $0x8] sm:$0xff] %vm317, %v1617
        %s1620 = sand.u32 %s142, 1
        %s1621 = scalar_lea.sflag [#allocation4], %s1620
        %s1622 = sand.u32 %s142, 1
        %s1623 = smul.addr %s1622, 16
        %s1624 = scalar_lea.vmem [#allocation10], %s1623
        // Predicated region
        $region57: #{tpu_custom_call.1} parent=39 // pred_check
          %p1625 = pneg %p152
        $region58: #{tpu_custom_call.1} parent=39 // pred_check_branch
          %1627 = sbr.rel (%p1625) target = $region60
        $region59: #{tpu_custom_call.1} parent=39 // pred_region
          %1629 = vsyncadd %s1621, 0
          %s1630 = smul.addr %s24, 2
          %s1631 = smul.addr %s1630, 8
          %s1632 = scalar_lea.hbm %s5, %s1631
          %s1633 = sshll.u32 %s1624, 4
          %s1634 = int_to_ptr.vmem [resolvable:$true] %s1633
          %s1635 = sshll.u32 %s1632, 4
          %s1636 = int_to_ptr.hbm [resolvable:$true] %s1635
          %1641 = dma.vmem_to_hbm [thread:$0]  %s1634, 256, %s1636, %s1621, 128, 128, 8
        $region60: #{tpu_custom_call.1} parent=39 // pred_fallthru
          _
      $region40: #{tpu_custom_call.1} parent=5 // pred_fallthru
        _
      %p1642 = scmp.le.s32.totalorder 2, %s19
      // Predicated region
      $region61: #{tpu_custom_call.1} parent=5 // pred_check
        %p1643 = pneg %p1642
      $region62: #{tpu_custom_call.1} parent=5 // pred_check_branch
        %1645 = sbr.rel (%p1643) target = $region64
      $region63: #{tpu_custom_call.1} parent=5 // pred_region
        %s1646 = ssub.s32 %s19, 2
        // Predicated region
        $region65: #{tpu_custom_call.1} parent=63 // pred_check
          %p1647 = pneg %p158
        $region66: #{tpu_custom_call.1} parent=63 // pred_check_branch
          %1649 = sbr.rel (%p1647) target = $region68
        $region67: #{tpu_custom_call.1} parent=63 // pred_region
          %s1650 = sand.u32 %s143, 1
          %s1651 = scalar_lea.sflag [#allocation4], %s1650
          %s1652 = sand.u32 %s143, 1
          %s1653 = smul.addr %s1652, 16
          %s1654 = scalar_lea.vmem [#allocation10], %s1653
          %1656 = dma.done %s1651, 256
        $region68: #{tpu_custom_call.1} parent=63 // pred_fallthru
          _
      $region64: #{tpu_custom_call.1} parent=5 // pred_fallthru
        _
    $region6: #{tpu_custom_call.1} parent=1 // loop_footer
      %s23 = sadd.s32 1, %s19
    $region7: #{tpu_custom_call.1} parent=1 // loop_footer_branch
      %18 = sbr.rel target = $region3
    $region8: #{tpu_custom_call.1} parent=1 // loop_exit
      _
    %1657 = vsyncpa [#allocation3], 1
    %s1658 = scalar_lea.sflag [#allocation3], 1
    %1659 = vsyncpa %s1658, 1
    %1660 = vsyncpa [#allocation6], 1
    %1661 = vsyncpa [#allocation9], 1
    %1662 = vsyncpa [#allocation4], 1
    %s1663 = scalar_lea.sflag [#allocation4], 1
    %1664 = vsyncpa %s1663, 1

</llo_original>
